<compile_context>
chip_gen: v7x
topology: tpu7x:2x2x1
jax: 0.10.0
libtpu: 0.0.40
codegen_flags: <defaults>
</compile_context>

<pallas_src>
import functools

import jax
import jax.numpy as jnp
from jax.experimental import pallas as pl
from jax.experimental.pallas import tpu as pltpu


def _bottleneck_kernel(x_ref, xup_ref, xdn_ref,
                       w1_ref, s1_ref, b1_ref,
                       w2_ref, s2_ref, b2_ref,
                       w3_ref, s3_ref, b3_ref,
                       o_ref, pad_ref):
    # x_ref block: (1, TH, W, Cin); xup/xdn: (1, 1, W, Cin) halo rows.
    _, TH, W, Cin = x_ref.shape
    P = w1_ref.shape[1]            # planes
    Cout = w3_ref.shape[1]         # planes * 4 == Cin

    i = pl.program_id(1)
    n_rows = pl.num_programs(1)

    # ---- conv1 (1x1) + bn1 + relu over tile + 1-row halo (one bf16 matmul) ----
    x_halo = jnp.concatenate([xup_ref[0], x_ref[0], xdn_ref[0]], axis=0)
    xh = x_halo.reshape((TH + 2) * W, Cin).astype(jnp.bfloat16)
    h1 = jnp.dot(xh, w1_ref[...], preferred_element_type=jnp.float32)
    h1 = jnp.maximum(h1 * s1_ref[...] + b1_ref[...], 0.0)
    h1 = h1.reshape(TH + 2, W, P)                       # (TH+2, W, P) f32

    # ---- write h1 (tile + halo) into the zero-bordered VMEM scratch ----
    pad_ref[:, 1:W + 1, :] = h1
    pad_ref[:, 0:1, :] = jnp.zeros((TH + 2, 1, P), jnp.float32)
    pad_ref[:, W + 1:W + 2, :] = jnp.zeros((TH + 2, 1, P), jnp.float32)

    @pl.when(i == 0)                      # top image border -> zero pad row
    def _():
        pad_ref[0:1, :, :] = jnp.zeros((1, W + 2, P), jnp.float32)

    @pl.when(i == n_rows - 1)             # bottom image border -> zero pad row
    def _():
        pad_ref[TH + 1:TH + 2, :, :] = jnp.zeros((1, W + 2, P), jnp.float32)

    # ---- conv2 (3x3, pad=1) as ONE wide-K (K = 9*P) bf16 matmul ----
    cols = [pad_ref[dy:dy + TH, dx:dx + W, :].reshape(TH * W, P)
            for dy in range(3) for dx in range(3)]
    im2col = jnp.concatenate(cols, axis=-1).astype(jnp.bfloat16)   # (TH*W, 9P)
    h2 = jnp.dot(im2col, w2_ref[...], preferred_element_type=jnp.float32)
    h2 = jnp.maximum(h2 * s2_ref[...] + b2_ref[...], 0.0)          # (TH*W, P)
    h2 = h2.astype(jnp.bfloat16)

    # ---- conv3 (1x1) + bn3 ----
    h3 = jnp.dot(h2, w3_ref[...], preferred_element_type=jnp.float32)
    h3 = h3 * s3_ref[...] + b3_ref[...]                            # (TH*W, Cout)

    # ---- residual add (re-read x_ref: tile is already resident in VMEM) ----
    res = x_ref[0].reshape(TH * W, Cin)
    out = jnp.maximum(h3 + res, 0.0)
    o_ref[0] = out.reshape(TH, W, Cout).astype(o_ref.dtype)


@functools.partial(jax.jit, static_argnames=("row_tile",))
def bottleneck_forward_nhwc(x, w1, s1, b1, w2, s2, b2, w3, s3, b3, row_tile=8):
    """x: (N, H, W, Cin) float32 NHWC.  Returns (N, H, W, Cin)."""
    N, H, W, Cin = x.shape
    P = w1.shape[1]
    Cout = w3.shape[1]
    assert Cout == Cin, "downsample=None requires inplanes == planes*4"

    # Row tile: largest divisor of H not exceeding row_tile.
    TH = min(H, row_tile)
    while H % TH:
        TH -= 1
    n_rows = H // TH

    # bf16 weights for the MXU; BN scale/bias stay f32.
    w1b = w1.astype(jnp.bfloat16)
    w2b = w2.reshape(9 * P, P).astype(jnp.bfloat16)   # tap-major -> K = 9P
    w3b = w3.astype(jnp.bfloat16)
    s1f, b1f = s1.astype(jnp.float32), b1.astype(jnp.float32)
    s2f, b2f = s2.astype(jnp.float32), b2.astype(jnp.float32)
    s3f, b3f = s3.astype(jnp.float32), b3.astype(jnp.float32)

    full = lambda a: pl.BlockSpec(a.shape, lambda n, i: (0,) * a.ndim)

    out = pl.pallas_call(
        _bottleneck_kernel,
        out_shape=jax.ShapeDtypeStruct((N, H, W, Cout), x.dtype),
        grid_spec=pltpu.PrefetchScalarGridSpec(
            num_scalar_prefetch=0,
            grid=(N, n_rows),
            in_specs=[
                # center tile
                pl.BlockSpec((1, TH, W, Cin), lambda n, i: (n, i, 0, 0)),
                # 1-row halo above (row index, clamped at the top border)
                pl.BlockSpec((1, 1, W, Cin),
                             lambda n, i: (n, jnp.maximum(i * TH - 1, 0), 0, 0)),
                # 1-row halo below (row index, clamped at the bottom border)
                pl.BlockSpec((1, 1, W, Cin),
                             lambda n, i: (n, jnp.minimum(i * TH + TH, H - 1), 0, 0)),
                full(w1b), full(s1f), full(b1f),
                full(w2b), full(s2f), full(b2f),
                full(w3b), full(s3f), full(b3f),
            ],
            out_specs=pl.BlockSpec((1, TH, W, Cout), lambda n, i: (n, i, 0, 0)),
            scratch_shapes=[pltpu.VMEM((TH + 2, W + 2, P), jnp.float32)],
        ),
        compiler_params=pltpu.CompilerParams(
            dimension_semantics=("parallel", "parallel"),
            vmem_limit_bytes=48 * 1024 * 1024),
    )(x, x, x, w1b, s1f, b1f, w2b, s2f, b2f, w3b, s3f, b3f)
    return out


def bottleneck_forward(x_nchw, *params):
    """NCHW drop-in wrapper matching the PyTorch module interface."""
    x = jnp.transpose(x_nchw, (0, 2, 3, 1))
    y = bottleneck_forward_nhwc(x, *params)
    return jnp.transpose(y, (0, 3, 1, 2))


def _ref_forward_nhwc(x, w1, s1, b1, w2, s2, b2, w3, s3, b3):
    """Pure-JAX NHWC reference (same math, high precision)."""
    N, H, W, Cin = x.shape
    mm = lambda a, b: jnp.einsum('nhwc,co->nhwo', a, b,
                                 precision=jax.lax.Precision.HIGHEST)
    h1 = jnp.maximum(mm(x, w1) * s1 + b1, 0.0)
    h1p = jnp.pad(h1, ((0, 0), (1, 1), (1, 1), (0, 0)))
    acc = jnp.zeros_like(h1)
    for k in range(9):
        dy, dx = k // 3, k % 3
        acc = acc + mm(h1p[:, dy:dy + H, dx:dx + W, :], w2[k])
    h2 = jnp.maximum(acc * s2 + b2, 0.0)
    h3 = mm(h2, w3) * s3 + b3
    return jnp.maximum(h3 + x, 0.0)


def _fold_bn(gamma, beta, mean, var, eps=1e-5):
    scale = gamma / jnp.sqrt(var + eps)
    bias = beta - mean * scale
    return scale[None, :], bias[None, :]


if __name__ == "__main__":
    # Small, module-consistent shapes: planes=8, inplanes=planes*4=32.
    N, H, W = 2, 16, 16
    planes = 8
    inplanes = planes * 4          # residual add requires inplanes == planes*4

    key = jax.random.PRNGKey(0)
    ks = jax.random.split(key, 8)

    x = jax.random.normal(ks[0], (N, H, W, inplanes), jnp.float32)   # NHWC

    # conv weights (synthetic, deterministic).  Layouts:
    #   w1: (Cin, P)   -- 1x1 conv as channel matmul
    #   w2: (9, P, P)  -- 3x3 conv, tap-major (k = dy*3 + dx)
    #   w3: (P, Cout)  -- 1x1 conv
    w1 = 0.1 * jax.random.normal(ks[1], (inplanes, planes), jnp.float32)
    w2 = 0.1 * jax.random.normal(ks[2], (9, planes, planes), jnp.float32)
    w3 = 0.1 * jax.random.normal(ks[3], (planes, planes * 4), jnp.float32)

    def bn_params(k, c):
        k1, k2, k3, k4 = jax.random.split(k, 4)
        gamma = 1.0 + 0.1 * jax.random.normal(k1, (c,), jnp.float32)
        beta = 0.1 * jax.random.normal(k2, (c,), jnp.float32)
        mean = 0.1 * jax.random.normal(k3, (c,), jnp.float32)
        var = 1.0 + 0.1 * jax.random.uniform(k4, (c,), jnp.float32)
        return _fold_bn(gamma, beta, mean, var)

    s1, b1 = bn_params(ks[4], planes)
    s2, b2 = bn_params(ks[5], planes)
    s3, b3 = bn_params(ks[6], planes * 4)

    params = (w1, s1, b1, w2, s2, b2, w3, s3, b3)

    # NHWC hot path (no wrapper transposes).
    out = jax.block_until_ready(bottleneck_forward_nhwc(x, *params))
    ref = _ref_forward_nhwc(x, *params)
    assert out.shape == (N, H, W, inplanes)
    assert jnp.allclose(out, ref, atol=2e-2, rtol=2e-2), "mismatch vs reference"

    # NCHW drop-in parity with the PyTorch module interface.
    x_nchw = jnp.transpose(x, (0, 3, 1, 2))
    out_nchw = jax.block_until_ready(bottleneck_forward(x_nchw, *params))
    ref_nchw = jnp.transpose(ref, (0, 3, 1, 2))
    assert jnp.allclose(out_nchw, ref_nchw, atol=2e-2, rtol=2e-2), "NCHW mismatch"

    print("KERNEL_OK")
</pallas_src>

<mosaic_0001>
module attributes {stable_mosaic.version = 11 : i64} {
  func.func @_bottleneck_kernel(%arg0: i32, %arg1: i32, %arg2: memref<1x8x16x32xf32, #tpu.memory_space<vmem>>, %arg3: memref<1x1x16x32xf32, #tpu.memory_space<vmem>>, %arg4: memref<1x1x16x32xf32, #tpu.memory_space<vmem>>, %arg5: memref<32x8xbf16, #tpu.memory_space<vmem>>, %arg6: memref<1x8xf32, #tpu.memory_space<vmem>>, %arg7: memref<1x8xf32, #tpu.memory_space<vmem>>, %arg8: memref<72x8xbf16, #tpu.memory_space<vmem>>, %arg9: memref<1x8xf32, #tpu.memory_space<vmem>>, %arg10: memref<1x8xf32, #tpu.memory_space<vmem>>, %arg11: memref<8x32xbf16, #tpu.memory_space<vmem>>, %arg12: memref<1x32xf32, #tpu.memory_space<vmem>>, %arg13: memref<1x32xf32, #tpu.memory_space<vmem>>, %arg14: memref<1x8x16x32xf32, #tpu.memory_space<vmem>>, %arg15: memref<10x18x8xf32, #tpu.memory_space<vmem>>) attributes {dimension_semantics = [#tpu.dimension_semantics<parallel>, #tpu.dimension_semantics<parallel>], iteration_bounds = array<i64: 2, 2>, scalar_prefetch = 0 : i64, scratch_operands = 1 : i64, tpu.core_type = #tpu.core_type<tc>, window_params = [{transform_indices = @transform_0, window_bounds = array<i64: 1, 8, 16, 32>}, {transform_indices = @transform_1, window_bounds = array<i64: 1, 1, 16, 32>}, {transform_indices = @transform_2, window_bounds = array<i64: 1, 1, 16, 32>}, {pipeline_mode = #tpu.pipeline_mode<synchronous>, transform_indices = @transform_3, window_bounds = array<i64: 32, 8>}, {pipeline_mode = #tpu.pipeline_mode<synchronous>, transform_indices = @transform_4, window_bounds = array<i64: 1, 8>}, {pipeline_mode = #tpu.pipeline_mode<synchronous>, transform_indices = @transform_5, window_bounds = array<i64: 1, 8>}, {pipeline_mode = #tpu.pipeline_mode<synchronous>, transform_indices = @transform_6, window_bounds = array<i64: 72, 8>}, {pipeline_mode = #tpu.pipeline_mode<synchronous>, transform_indices = @transform_7, window_bounds = array<i64: 1, 8>}, {pipeline_mode = #tpu.pipeline_mode<synchronous>, transform_indices = @transform_8, window_bounds = array<i64: 1, 8>}, {pipeline_mode = #tpu.pipeline_mode<synchronous>, transform_indices = @transform_9, window_bounds = array<i64: 8, 32>}, {pipeline_mode = #tpu.pipeline_mode<synchronous>, transform_indices = @transform_10, window_bounds = array<i64: 1, 32>}, {pipeline_mode = #tpu.pipeline_mode<synchronous>, transform_indices = @transform_11, window_bounds = array<i64: 1, 32>}, {transform_indices = @transform_12, window_bounds = array<i64: 1, 8, 16, 32>}]} {
    %c0 = arith.constant 0 : index
    %c0_0 = arith.constant 0 : index
    %c0_1 = arith.constant 0 : index
    %c0_2 = arith.constant 0 : index
    %0 = vector.load %arg3[%c0, %c0_0, %c0_1, %c0_2] : memref<1x1x16x32xf32, #tpu.memory_space<vmem>>, vector<1x1x16x32xf32>
    %1 = vector.shape_cast %0 : vector<1x1x16x32xf32> to vector<1x16x32xf32>
    %c0_3 = arith.constant 0 : index
    %c0_4 = arith.constant 0 : index
    %c0_5 = arith.constant 0 : index
    %c0_6 = arith.constant 0 : index
    %2 = vector.load %arg2[%c0_3, %c0_4, %c0_5, %c0_6] : memref<1x8x16x32xf32, #tpu.memory_space<vmem>>, vector<1x8x16x32xf32>
    %3 = vector.shape_cast %2 : vector<1x8x16x32xf32> to vector<8x16x32xf32>
    %c0_7 = arith.constant 0 : index
    %c0_8 = arith.constant 0 : index
    %c0_9 = arith.constant 0 : index
    %c0_10 = arith.constant 0 : index
    %4 = vector.load %arg4[%c0_7, %c0_8, %c0_9, %c0_10] : memref<1x1x16x32xf32, #tpu.memory_space<vmem>>, vector<1x1x16x32xf32>
    %5 = vector.shape_cast %4 : vector<1x1x16x32xf32> to vector<1x16x32xf32>
    %6 = tpu.concatenate %1, %3, %5 in 0 : vector<1x16x32xf32>, vector<8x16x32xf32>, vector<1x16x32xf32> -> vector<10x16x32xf32>
    %7 = vector.shape_cast %6 : vector<10x16x32xf32> to vector<160x32xf32>
    %8 = arith.truncf %7 : vector<160x32xf32> to vector<160x32xbf16>
    %c0_11 = arith.constant 0 : index
    %c0_12 = arith.constant 0 : index
    %9 = vector.load %arg5[%c0_11, %c0_12] : memref<32x8xbf16, #tpu.memory_space<vmem>>, vector<32x8xbf16>
    %cst = arith.constant dense<0.000000e+00> : vector<160x8xf32>
    %10 = tpu.matmul %8, %9, %cst {dimension_numbers = #tpu.dot_dimension_numbers<[1], [0], [0], [1], [0, 0, 1, 1], [], []>} : vector<160x32xbf16>, vector<32x8xbf16>, vector<160x8xf32> -> vector<160x8xf32>
    %c0_13 = arith.constant 0 : index
    %c0_14 = arith.constant 0 : index
    %11 = vector.load %arg6[%c0_13, %c0_14] : memref<1x8xf32, #tpu.memory_space<vmem>>, vector<1x8xf32>
    %12 = vector.broadcast %11 : vector<1x8xf32> to vector<160x8xf32>
    %13 = arith.mulf %10, %12 : vector<160x8xf32>
    %c0_15 = arith.constant 0 : index
    %c0_16 = arith.constant 0 : index
    %14 = vector.load %arg7[%c0_15, %c0_16] : memref<1x8xf32, #tpu.memory_space<vmem>>, vector<1x8xf32>
    %15 = vector.broadcast %14 : vector<1x8xf32> to vector<160x8xf32>
    %16 = arith.addf %13, %15 : vector<160x8xf32>
    %cst_17 = arith.constant 0.000000e+00 : f32
    %17 = vector.broadcast %cst_17 : f32 to vector<160x8xf32>
    %18 = arith.maximumf %16, %17 : vector<160x8xf32>
    %19 = vector.shape_cast %18 : vector<160x8xf32> to vector<10x16x8xf32>
    %c0_18 = arith.constant 0 : index
    %c1 = arith.constant 1 : index
    %c0_19 = arith.constant 0 : index
    %20 = vector.load %arg15[%c0_18, %c1, %c0_19] : memref<10x18x8xf32, #tpu.memory_space<vmem>>, vector<10x16x8xf32>
    tpu.vector_store %arg15[%c0_18, %c1, %c0_19], %19 {strides = array<i32>} : memref<10x18x8xf32, #tpu.memory_space<vmem>>, vector<10x16x8xf32>,
    %cst_20 = arith.constant 0.000000e+00 : f32
    %21 = vector.broadcast %cst_20 : f32 to vector<10x1x8xf32>
    %c0_21 = arith.constant 0 : index
    %c0_22 = arith.constant 0 : index
    %c0_23 = arith.constant 0 : index
    %22 = vector.load %arg15[%c0_21, %c0_22, %c0_23] : memref<10x18x8xf32, #tpu.memory_space<vmem>>, vector<10x1x8xf32>
    tpu.vector_store %arg15[%c0_21, %c0_22, %c0_23], %21 {strides = array<i32>} : memref<10x18x8xf32, #tpu.memory_space<vmem>>, vector<10x1x8xf32>,
    %cst_24 = arith.constant 0.000000e+00 : f32
    %23 = vector.broadcast %cst_24 : f32 to vector<10x1x8xf32>
    %c0_25 = arith.constant 0 : index
    %c17 = arith.constant 17 : index
    %c0_26 = arith.constant 0 : index
    %24 = vector.load %arg15[%c0_25, %c17, %c0_26] : memref<10x18x8xf32, #tpu.memory_space<vmem>>, vector<10x1x8xf32>
    tpu.vector_store %arg15[%c0_25, %c17, %c0_26], %23 {strides = array<i32>} : memref<10x18x8xf32, #tpu.memory_space<vmem>>, vector<10x1x8xf32>,
    %c0_i32 = arith.constant 0 : i32
    %25 = arith.cmpi eq, %arg1, %c0_i32 : i32
    %26 = arith.extui %25 : i1 to i32
    %c0_i32_27 = arith.constant 0 : i32
    %27 = arith.cmpi ne, %26, %c0_i32_27 : i32
    scf.if %27 {
      %cst_79 = arith.constant 0.000000e+00 : f32
      %80 = vector.broadcast %cst_79 : f32 to vector<1x18x8xf32>
      %c0_80 = arith.constant 0 : index
      %c0_81 = arith.constant 0 : index
      %c0_82 = arith.constant 0 : index
      %81 = vector.load %arg15[%c0_80, %c0_81, %c0_82] : memref<10x18x8xf32, #tpu.memory_space<vmem>>, vector<1x18x8xf32>
      tpu.vector_store %arg15[%c0_80, %c0_81, %c0_82], %80 {strides = array<i32>} : memref<10x18x8xf32, #tpu.memory_space<vmem>>, vector<1x18x8xf32>,
    } else {
    }
    %c1_i32 = arith.constant 1 : i32
    %28 = arith.cmpi eq, %arg1, %c1_i32 : i32
    %29 = arith.extui %28 : i1 to i32
    %c0_i32_28 = arith.constant 0 : i32
    %30 = arith.cmpi ne, %29, %c0_i32_28 : i32
    scf.if %30 {
      %cst_79 = arith.constant 0.000000e+00 : f32
      %80 = vector.broadcast %cst_79 : f32 to vector<1x18x8xf32>
      %c9 = arith.constant 9 : index
      %c0_80 = arith.constant 0 : index
      %c0_81 = arith.constant 0 : index
      %81 = vector.load %arg15[%c9, %c0_80, %c0_81] : memref<10x18x8xf32, #tpu.memory_space<vmem>>, vector<1x18x8xf32>
      tpu.vector_store %arg15[%c9, %c0_80, %c0_81], %80 {strides = array<i32>} : memref<10x18x8xf32, #tpu.memory_space<vmem>>, vector<1x18x8xf32>,
    } else {
    }
    %c0_29 = arith.constant 0 : index
    %c0_30 = arith.constant 0 : index
    %c0_31 = arith.constant 0 : index
    %31 = vector.load %arg15[%c0_29, %c0_30, %c0_31] : memref<10x18x8xf32, #tpu.memory_space<vmem>>, vector<8x16x8xf32>
    %32 = vector.shape_cast %31 : vector<8x16x8xf32> to vector<128x8xf32>
    %c0_32 = arith.constant 0 : index
    %c1_33 = arith.constant 1 : index
    %c0_34 = arith.constant 0 : index
    %33 = vector.load %arg15[%c0_32, %c1_33, %c0_34] : memref<10x18x8xf32, #tpu.memory_space<vmem>>, vector<8x16x8xf32>
    %34 = vector.shape_cast %33 : vector<8x16x8xf32> to vector<128x8xf32>
    %c0_35 = arith.constant 0 : index
    %c2 = arith.constant 2 : index
    %c0_36 = arith.constant 0 : index
    %35 = vector.load %arg15[%c0_35, %c2, %c0_36] : memref<10x18x8xf32, #tpu.memory_space<vmem>>, vector<8x16x8xf32>
    %36 = vector.shape_cast %35 : vector<8x16x8xf32> to vector<128x8xf32>
    %c1_37 = arith.constant 1 : index
    %c0_38 = arith.constant 0 : index
    %c0_39 = arith.constant 0 : index
    %37 = vector.load %arg15[%c1_37, %c0_38, %c0_39] : memref<10x18x8xf32, #tpu.memory_space<vmem>>, vector<8x16x8xf32>
    %38 = vector.shape_cast %37 : vector<8x16x8xf32> to vector<128x8xf32>
    %c1_40 = arith.constant 1 : index
    %c1_41 = arith.constant 1 : index
    %c0_42 = arith.constant 0 : index
    %39 = vector.load %arg15[%c1_40, %c1_41, %c0_42] : memref<10x18x8xf32, #tpu.memory_space<vmem>>, vector<8x16x8xf32>
    %40 = vector.shape_cast %39 : vector<8x16x8xf32> to vector<128x8xf32>
    %c1_43 = arith.constant 1 : index
    %c2_44 = arith.constant 2 : index
    %c0_45 = arith.constant 0 : index
    %41 = vector.load %arg15[%c1_43, %c2_44, %c0_45] : memref<10x18x8xf32, #tpu.memory_space<vmem>>, vector<8x16x8xf32>
    %42 = vector.shape_cast %41 : vector<8x16x8xf32> to vector<128x8xf32>
    %c2_46 = arith.constant 2 : index
    %c0_47 = arith.constant 0 : index
    %c0_48 = arith.constant 0 : index
    %43 = vector.load %arg15[%c2_46, %c0_47, %c0_48] : memref<10x18x8xf32, #tpu.memory_space<vmem>>, vector<8x16x8xf32>
    %44 = vector.shape_cast %43 : vector<8x16x8xf32> to vector<128x8xf32>
    %c2_49 = arith.constant 2 : index
    %c1_50 = arith.constant 1 : index
    %c0_51 = arith.constant 0 : index
    %45 = vector.load %arg15[%c2_49, %c1_50, %c0_51] : memref<10x18x8xf32, #tpu.memory_space<vmem>>, vector<8x16x8xf32>
    %46 = vector.shape_cast %45 : vector<8x16x8xf32> to vector<128x8xf32>
    %c2_52 = arith.constant 2 : index
    %c2_53 = arith.constant 2 : index
    %c0_54 = arith.constant 0 : index
    %47 = vector.load %arg15[%c2_52, %c2_53, %c0_54] : memref<10x18x8xf32, #tpu.memory_space<vmem>>, vector<8x16x8xf32>
    %48 = vector.shape_cast %47 : vector<8x16x8xf32> to vector<128x8xf32>
    %49 = tpu.concatenate %32, %34, %36, %38, %40, %42, %44, %46, %48 in 1 : vector<128x8xf32>, vector<128x8xf32>, vector<128x8xf32>, vector<128x8xf32>, vector<128x8xf32>, vector<128x8xf32>, vector<128x8xf32>, vector<128x8xf32>, vector<128x8xf32> -> vector<128x72xf32>
    %50 = arith.truncf %49 : vector<128x72xf32> to vector<128x72xbf16>
    %c0_55 = arith.constant 0 : index
    %c0_56 = arith.constant 0 : index
    %51 = vector.load %arg8[%c0_55, %c0_56] : memref<72x8xbf16, #tpu.memory_space<vmem>>, vector<72x8xbf16>
    %cst_57 = arith.constant dense<0.000000e+00> : vector<128x8xf32>
    %52 = tpu.matmul %50, %51, %cst_57 {dimension_numbers = #tpu.dot_dimension_numbers<[1], [0], [0], [1], [0, 0, 1, 1], [], []>} : vector<128x72xbf16>, vector<72x8xbf16>, vector<128x8xf32> -> vector<128x8xf32>
    %c0_58 = arith.constant 0 : index
    %c0_59 = arith.constant 0 : index
    %53 = vector.load %arg9[%c0_58, %c0_59] : memref<1x8xf32, #tpu.memory_space<vmem>>, vector<1x8xf32>
    %54 = vector.broadcast %53 : vector<1x8xf32> to vector<128x8xf32>
    %55 = arith.mulf %52, %54 : vector<128x8xf32>
    %c0_60 = arith.constant 0 : index
    %c0_61 = arith.constant 0 : index
    %56 = vector.load %arg10[%c0_60, %c0_61] : memref<1x8xf32, #tpu.memory_space<vmem>>, vector<1x8xf32>
    %57 = vector.broadcast %56 : vector<1x8xf32> to vector<128x8xf32>
    %58 = arith.addf %55, %57 : vector<128x8xf32>
    %cst_62 = arith.constant 0.000000e+00 : f32
    %59 = vector.broadcast %cst_62 : f32 to vector<128x8xf32>
    %60 = arith.maximumf %58, %59 : vector<128x8xf32>
    %61 = arith.truncf %60 : vector<128x8xf32> to vector<128x8xbf16>
    %c0_63 = arith.constant 0 : index
    %c0_64 = arith.constant 0 : index
    %62 = vector.load %arg11[%c0_63, %c0_64] : memref<8x32xbf16, #tpu.memory_space<vmem>>, vector<8x32xbf16>
    %cst_65 = arith.constant dense<0.000000e+00> : vector<128x32xf32>
    %63 = tpu.matmul %61, %62, %cst_65 {dimension_numbers = #tpu.dot_dimension_numbers<[1], [0], [0], [1], [0, 0, 1, 1], [], []>} : vector<128x8xbf16>, vector<8x32xbf16>, vector<128x32xf32> -> vector<128x32xf32>
    %c0_66 = arith.constant 0 : index
    %c0_67 = arith.constant 0 : index
    %64 = vector.load %arg12[%c0_66, %c0_67] : memref<1x32xf32, #tpu.memory_space<vmem>>, vector<1x32xf32>
    %65 = vector.broadcast %64 : vector<1x32xf32> to vector<128x32xf32>
    %66 = arith.mulf %63, %65 : vector<128x32xf32>
    %c0_68 = arith.constant 0 : index
    %c0_69 = arith.constant 0 : index
    %67 = vector.load %arg13[%c0_68, %c0_69] : memref<1x32xf32, #tpu.memory_space<vmem>>, vector<1x32xf32>
    %68 = vector.broadcast %67 : vector<1x32xf32> to vector<128x32xf32>
    %69 = arith.addf %66, %68 : vector<128x32xf32>
    %c0_70 = arith.constant 0 : index
    %c0_71 = arith.constant 0 : index
    %c0_72 = arith.constant 0 : index
    %c0_73 = arith.constant 0 : index
    %70 = vector.load %arg2[%c0_70, %c0_71, %c0_72, %c0_73] : memref<1x8x16x32xf32, #tpu.memory_space<vmem>>, vector<1x8x16x32xf32>
    %71 = vector.shape_cast %70 : vector<1x8x16x32xf32> to vector<8x16x32xf32>
    %72 = vector.shape_cast %71 : vector<8x16x32xf32> to vector<128x32xf32>
    %73 = arith.addf %69, %72 : vector<128x32xf32>
    %cst_74 = arith.constant 0.000000e+00 : f32
    %74 = vector.broadcast %cst_74 : f32 to vector<128x32xf32>
    %75 = arith.maximumf %73, %74 : vector<128x32xf32>
    %76 = vector.shape_cast %75 : vector<128x32xf32> to vector<8x16x32xf32>
    %c0_75 = arith.constant 0 : index
    %c0_76 = arith.constant 0 : index
    %c0_77 = arith.constant 0 : index
    %c0_78 = arith.constant 0 : index
    %77 = vector.load %arg14[%c0_75, %c0_76, %c0_77, %c0_78] : memref<1x8x16x32xf32, #tpu.memory_space<vmem>>, vector<1x8x16x32xf32>
    %78 = vector.shape_cast %77 : vector<1x8x16x32xf32> to vector<8x16x32xf32>
    %79 = vector.shape_cast %76 : vector<8x16x32xf32> to vector<1x8x16x32xf32>
    tpu.vector_store %arg14[%c0_75, %c0_76, %c0_77, %c0_78], %79 {strides = array<i32>} : memref<1x8x16x32xf32, #tpu.memory_space<vmem>>, vector<1x8x16x32xf32>,
    return
  }
  func.func @transform_0(%arg0: i32, %arg1: i32) -> (i32, i32, i32, i32) {
    %c0_i32 = arith.constant 0 : i32
    %c0_i32_0 = arith.constant 0 : i32
    %c0_i32_1 = arith.constant 0 : i32
    return %arg0, %arg1, %c0_i32, %c0_i32_0 : i32, i32, i32, i32
  }
  func.func @transform_1(%arg0: i32, %arg1: i32) -> (i32, i32, i32, i32) {
    %c8_i32 = arith.constant 8 : i32
    %0 = arith.muli %arg1, %c8_i32 : i32
    %c1_i32 = arith.constant 1 : i32
    %1 = arith.subi %0, %c1_i32 : i32
    %c0_i32 = arith.constant 0 : i32
    %2 = arith.maxsi %1, %c0_i32 : i32
    %c0_i32_0 = arith.constant 0 : i32
    %c0_i32_1 = arith.constant 0 : i32
    %c0_i32_2 = arith.constant 0 : i32
    return %arg0, %2, %c0_i32_0, %c0_i32_1 : i32, i32, i32, i32
  }
  func.func @transform_2(%arg0: i32, %arg1: i32) -> (i32, i32, i32, i32) {
    %c8_i32 = arith.constant 8 : i32
    %0 = arith.muli %arg1, %c8_i32 : i32
    %c8_i32_0 = arith.constant 8 : i32
    %1 = arith.addi %0, %c8_i32_0 : i32
    %c15_i32 = arith.constant 15 : i32
    %2 = arith.minsi %1, %c15_i32 : i32
    %c0_i32 = arith.constant 0 : i32
    %c0_i32_1 = arith.constant 0 : i32
    %c0_i32_2 = arith.constant 0 : i32
    return %arg0, %2, %c0_i32, %c0_i32_1 : i32, i32, i32, i32
  }
  func.func @transform_3(%arg0: i32, %arg1: i32) -> (i32, i32) {
    %c0_i32 = arith.constant 0 : i32
    %c0_i32_0 = arith.constant 0 : i32
    %c0_i32_1 = arith.constant 0 : i32
    return %c0_i32, %c0_i32_0 : i32, i32
  }
  func.func @transform_4(%arg0: i32, %arg1: i32) -> (i32, i32) {
    %c0_i32 = arith.constant 0 : i32
    %c0_i32_0 = arith.constant 0 : i32
    %c0_i32_1 = arith.constant 0 : i32
    return %c0_i32, %c0_i32_0 : i32, i32
  }
  func.func @transform_5(%arg0: i32, %arg1: i32) -> (i32, i32) {
    %c0_i32 = arith.constant 0 : i32
    %c0_i32_0 = arith.constant 0 : i32
    %c0_i32_1 = arith.constant 0 : i32
    return %c0_i32, %c0_i32_0 : i32, i32
  }
  func.func @transform_6(%arg0: i32, %arg1: i32) -> (i32, i32) {
    %c0_i32 = arith.constant 0 : i32
    %c0_i32_0 = arith.constant 0 : i32
    %c0_i32_1 = arith.constant 0 : i32
    return %c0_i32, %c0_i32_0 : i32, i32
  }
  func.func @transform_7(%arg0: i32, %arg1: i32) -> (i32, i32) {
    %c0_i32 = arith.constant 0 : i32
    %c0_i32_0 = arith.constant 0 : i32
    %c0_i32_1 = arith.constant 0 : i32
    return %c0_i32, %c0_i32_0 : i32, i32
  }
  func.func @transform_8(%arg0: i32, %arg1: i32) -> (i32, i32) {
    %c0_i32 = arith.constant 0 : i32
    %c0_i32_0 = arith.constant 0 : i32
    %c0_i32_1 = arith.constant 0 : i32
    return %c0_i32, %c0_i32_0 : i32, i32
  }
  func.func @transform_9(%arg0: i32, %arg1: i32) -> (i32, i32) {
    %c0_i32 = arith.constant 0 : i32
    %c0_i32_0 = arith.constant 0 : i32
    %c0_i32_1 = arith.constant 0 : i32
    return %c0_i32, %c0_i32_0 : i32, i32
  }
  func.func @transform_10(%arg0: i32, %arg1: i32) -> (i32, i32) {
    %c0_i32 = arith.constant 0 : i32
    %c0_i32_0 = arith.constant 0 : i32
    %c0_i32_1 = arith.constant 0 : i32
    return %c0_i32, %c0_i32_0 : i32, i32
  }
  func.func @transform_11(%arg0: i32, %arg1: i32) -> (i32, i32) {
    %c0_i32 = arith.constant 0 : i32
    %c0_i32_0 = arith.constant 0 : i32
    %c0_i32_1 = arith.constant 0 : i32
    return %c0_i32, %c0_i32_0 : i32, i32
  }
  func.func @transform_12(%arg0: i32, %arg1: i32) -> (i32, i32, i32, i32) {
    %c0_i32 = arith.constant 0 : i32
    %c0_i32_0 = arith.constant 0 : i32
    %c0_i32_1 = arith.constant 0 : i32
    return %arg0, %arg1, %c0_i32, %c0_i32_0 : i32, i32, i32, i32
  }
}

</mosaic_0001>

<llo_original>
// kernel: bottleneck_forward_nhwc.1
$region0: #{bottleneck_forward_nhwc.1}
  #allocation0 [shape = 'u32[]', space=smem, size = 0x4, offset = 0x4, fixed_abs, tag = 'smem constant byte address 0x4 - core index']
  #allocation1 [shape = 'u32[144,128]{1,0:T(1,128)}', space=vmem, size = 0x12000, scoped, tag = 'internal scratch']
  #allocation2 [shape = 'f32[10,18,8]{2,1,0:T(8,128)}', space=vmem, size = 0x1e000, scoped, tag = 'scratch operand']
  %s0 = inlined_call_operand.hbm [shape: f32[2,16,16,32], index: 0, kind: input, shape index: {}, may-alias: {0,1,2}]
  %s1 = inlined_call_operand.hbm [shape: f32[2,16,16,32], index: 1, kind: input, shape index: {}, may-alias: {0,1,2}]
  %s2 = inlined_call_operand.hbm [shape: f32[2,16,16,32], index: 2, kind: input, shape index: {}, may-alias: {0,1,2}]
  %s3 = inlined_call_operand.vmem [shape: bf16[32,8], index: 3, kind: input, shape index: {}]
  %s4 = inlined_call_operand.vmem [shape: f32[1,8], index: 4, kind: input, shape index: {}]
  %s5 = inlined_call_operand.vmem [shape: f32[1,8], index: 5, kind: input, shape index: {}]
  %s6 = inlined_call_operand.vmem [shape: bf16[72,8], index: 6, kind: input, shape index: {}]
  %s7 = inlined_call_operand.vmem [shape: f32[1,8], index: 7, kind: input, shape index: {}]
  %s8 = inlined_call_operand.vmem [shape: f32[1,8], index: 8, kind: input, shape index: {}]
  %s9 = inlined_call_operand.vmem [shape: bf16[8,32], index: 9, kind: input, shape index: {}]
  %s10 = inlined_call_operand.vmem [shape: f32[1,32], index: 10, kind: input, shape index: {}]
  %s11 = inlined_call_operand.vmem [shape: f32[1,32], index: 11, kind: input, shape index: {}]
  %s12 = inlined_call_operand.hbm [shape: f32[2,16,16,32], index: 12, kind: output, shape index: {}]
  %s13 = sld [smem:[#allocation0]]
  $region101: #{bottleneck_forward_nhwc.1} parent=0
    _
  %s15 = ssub.s32 1, %s13
  %s16 = scalar_select 0, %s15, %s13
  $region1: #{bottleneck_forward_nhwc.1} parent=0
    #allocation3 [shape = 'u8[131072]{0}', space=vmem, size = 0x20000, scoped, tag = 'input window, operand 0']
    #allocation4 [shape = 's32[2]{0}', space=sflag, size = 0x8, scoped, tag = 'scoped memory for bottleneck_forward_nhwc.1']
    #allocation5 [shape = 's32[2]{0}', space=sflag, size = 0x8, scoped, tag = 'scoped memory for bottleneck_forward_nhwc.1']
    #allocation6 [shape = 'u8[16384]{0}', space=vmem, size = 0x4000, scoped, tag = 'input window, operand 1']
    #allocation7 [shape = 's32[2]{0}', space=sflag, size = 0x8, scoped, tag = 'scoped memory for bottleneck_forward_nhwc.1']
    #allocation8 [shape = 'u8[16384]{0}', space=vmem, size = 0x4000, scoped, tag = 'input window, operand 2']
    #allocation9 [shape = 'u8[131072]{0}', space=vmem, size = 0x20000, scoped, tag = 'output window, operand 0']
    %17 = vsyncpa [#allocation4], 0
    %s18 = scalar_lea.sflag [#allocation4], 1
    %19 = vsyncpa %s18, 0
    %20 = vsyncpa [#allocation7], 0
    %s21 = scalar_lea.sflag [#allocation7], 1
    %22 = vsyncpa %s21, 0
    %23 = vsyncpa [#allocation5], 0
    %s24 = scalar_lea.sflag [#allocation5], 1
    %25 = vsyncpa %s24, 0
    loop: start=0, step=1, limit=6
    $region2: #{bottleneck_forward_nhwc.1} parent=1 // loop_pre_header
      _
    $region3: #{bottleneck_forward_nhwc.1} parent=1 // loop_header
      %s27 = sphi 0, %s31
      %p28 = scmp.ge.s32.totalorder %s27, 6
      %s34 = sphi 0, %s46
      %s35 = sphi 0, %s42
      %s36 = sphi 0, %s34
      %s37 = sphi 0, %s35
      %s38 = sphi 0, %s36
      %s39 = sphi 0, %s37
      %s51 = sphi 0, %s53
      %s54 = sphi 0, %s51
      %s55 = sphi 0, %s54
      %s71 = sphi 0, %s55
      %s87 = sphi 0, %s89
      %s90 = sphi 0, %s87
      %s91 = sphi 0, %s90
      %s107 = sphi 0, %s91
      %s123 = sphi 0, %s125
      %s126 = sphi 0, %s123
      %s127 = sphi 0, %s126
      %s143 = sphi 0, %s127
      %s147 = sphi 0, %s147
      %s149 = sphi 0, %s147
      %s150 = sphi 0, %s149
      %s164 = sphi 0, %s150
      %s168 = sphi 0, %s168
      %s170 = sphi 0, %s168
      %s171 = sphi 0, %s170
      %s185 = sphi 0, %s171
      %s189 = sphi 0, %s189
      %s191 = sphi 0, %s189
      %s192 = sphi 0, %s191
      %s206 = sphi 0, %s192
      %s210 = sphi 0, %s210
      %s212 = sphi 0, %s210
      %s213 = sphi 0, %s212
      %s227 = sphi 0, %s213
      %s231 = sphi 0, %s231
      %s233 = sphi 0, %s231
      %s234 = sphi 0, %s233
      %s248 = sphi 0, %s234
      %s252 = sphi 0, %s252
      %s254 = sphi 0, %s252
      %s255 = sphi 0, %s254
      %s269 = sphi 0, %s255
      %s273 = sphi 0, %s273
      %s275 = sphi 0, %s273
      %s276 = sphi 0, %s275
      %s290 = sphi 0, %s276
      %s294 = sphi 0, %s294
      %s296 = sphi 0, %s294
      %s297 = sphi 0, %s296
      %s311 = sphi 0, %s297
      %s315 = sphi 0, %s315
      %s317 = sphi 0, %s315
      %s318 = sphi 0, %s317
      %s332 = sphi 0, %s318
      %s340 = sphi 0, %s342
      %s343 = sphi 0, %s340
      %s344 = sphi 0, %s343
      %s360 = sphi 0, %s344
    $region4: #{bottleneck_forward_nhwc.1} parent=1 // loop_header_branch
      %30 = sbr.rel (%p28) target = $region8
    $region5: #{bottleneck_forward_nhwc.1} parent=1 // loop_body
      %s32 = ssub.s32 %s27, 1
      %s33 = ssub.s32 %s27, 2
      %s40 = sadd.s32 1, %s35
      %p41 = scmp.ge.s32.totalorder %s40, 2
      %s42 = scalar_select %p41, 0, %s40
      %s43 = sadd.s32 1, %s34
      %s44 = scalar_select %p41, %s43, %s34
      %p45 = scmp.ge.s32.totalorder %s44, 2
      %s46 = scalar_select %p45, 0, %s44
      %s47 = ssub.s32 %s34, %s46
      %s48 = ssub.s32 %s35, %s42
      %s49 = sor.u32 %s47, %s48
      %p50 = scmp.eq.s32.totalorder %s49, 0
      %s52 = sadd.s32 %s51, 1
      %s53 = scalar_select %p50, %s51, %s52
      %p56 = pneg %p50
      %p57 = scmp.eq.s32.totalorder %s27, 3
      %p58 = por %p56, %p57
      %p59 = scmp.ne.s32.totalorder %s51, %s54
      %p60 = scmp.eq.s32.totalorder %s27, 0
      %p61 = por %p59, %p60
      %p62 = scmp.ne.s32.totalorder %s51, %s54
      %p63 = scmp.eq.s32.totalorder %s32, 3
      %p64 = por %p62, %p63
      %p65 = scmp.ne.s32.totalorder %s54, %s55
      %p66 = scmp.eq.s32.totalorder %s32, 0
      %p67 = por %p65, %p66
      %p68 = scmp.ne.s32.totalorder %s54, %s55
      %p69 = scmp.eq.s32.totalorder %s33, 3
      %p70 = por %p68, %p69
      %p72 = scmp.ne.s32.totalorder %s55, %s71
      %p73 = scmp.eq.s32.totalorder %s33, 0
      %p74 = por %p72, %p73
      %s75 = smul.u32 %s35, 8
      %s76 = ssub.s32 %s75, 1
      %p77 = scmp.gt.s32.totalorder %s76, 0
      %s78 = scalar_select %p77, %s76, 0
      %s79 = smul.u32 %s42, 8
      %s80 = ssub.s32 %s79, 1
      %p81 = scmp.gt.s32.totalorder %s80, 0
      %s82 = scalar_select %p81, %s80, 0
      %s83 = ssub.s32 %s34, %s46
      %s84 = ssub.s32 %s78, %s82
      %s85 = sor.u32 %s83, %s84
      %p86 = scmp.eq.s32.totalorder %s85, 0
      %s88 = sadd.s32 %s87, 1
      %s89 = scalar_select %p86, %s87, %s88
      %p92 = pneg %p86
      %p93 = scmp.eq.s32.totalorder %s27, 3
      %p94 = por %p92, %p93
      %p95 = scmp.ne.s32.totalorder %s87, %s90
      %p96 = scmp.eq.s32.totalorder %s27, 0
      %p97 = por %p95, %p96
      %p98 = scmp.ne.s32.totalorder %s87, %s90
      %p99 = scmp.eq.s32.totalorder %s32, 3
      %p100 = por %p98, %p99
      %p101 = scmp.ne.s32.totalorder %s90, %s91
      %p102 = scmp.eq.s32.totalorder %s32, 0
      %p103 = por %p101, %p102
      %p104 = scmp.ne.s32.totalorder %s90, %s91
      %p105 = scmp.eq.s32.totalorder %s33, 3
      %p106 = por %p104, %p105
      %p108 = scmp.ne.s32.totalorder %s91, %s107
      %p109 = scmp.eq.s32.totalorder %s33, 0
      %p110 = por %p108, %p109
      %s111 = smul.u32 %s35, 8
      %s112 = sadd.s32 %s111, 8
      %p113 = scmp.lt.s32.totalorder %s112, 15
      %s114 = scalar_select %p113, %s112, 15
      %s115 = smul.u32 %s42, 8
      %s116 = sadd.s32 %s115, 8
      %p117 = scmp.lt.s32.totalorder %s116, 15
      %s118 = scalar_select %p117, %s116, 15
      %s119 = ssub.s32 %s34, %s46
      %s120 = ssub.s32 %s114, %s118
      %s121 = sor.u32 %s119, %s120
      %p122 = scmp.eq.s32.totalorder %s121, 0
      %s124 = sadd.s32 %s123, 1
      %s125 = scalar_select %p122, %s123, %s124
      %p128 = pneg %p122
      %p129 = scmp.eq.s32.totalorder %s27, 3
      %p130 = por %p128, %p129
      %p131 = scmp.ne.s32.totalorder %s123, %s126
      %p132 = scmp.eq.s32.totalorder %s27, 0
      %p133 = por %p131, %p132
      %p134 = scmp.ne.s32.totalorder %s123, %s126
      %p135 = scmp.eq.s32.totalorder %s32, 3
      %p136 = por %p134, %p135
      %p137 = scmp.ne.s32.totalorder %s126, %s127
      %p138 = scmp.eq.s32.totalorder %s32, 0
      %p139 = por %p137, %p138
      %p140 = scmp.ne.s32.totalorder %s126, %s127
      %p141 = scmp.eq.s32.totalorder %s33, 3
      %p142 = por %p140, %p141
      %p144 = scmp.ne.s32.totalorder %s127, %s143
      %p145 = scmp.eq.s32.totalorder %s33, 0
      %p146 = por %p144, %p145
      %s148 = sadd.s32 %s147, 1
      %p151 = scmp.eq.s32.totalorder %s27, 3
      %p152 = scmp.ne.s32.totalorder %s147, %s149
      %p153 = scmp.eq.s32.totalorder %s27, 0
      %p154 = por %p152, %p153
      %p155 = scmp.ne.s32.totalorder %s147, %s149
      %p156 = scmp.eq.s32.totalorder %s32, 3
      %p157 = por %p155, %p156
      %p158 = scmp.ne.s32.totalorder %s149, %s150
      %p159 = scmp.eq.s32.totalorder %s32, 0
      %p160 = por %p158, %p159
      %p161 = scmp.ne.s32.totalorder %s149, %s150
      %p162 = scmp.eq.s32.totalorder %s33, 3
      %p163 = por %p161, %p162
      %p165 = scmp.ne.s32.totalorder %s150, %s164
      %p166 = scmp.eq.s32.totalorder %s33, 0
      %p167 = por %p165, %p166
      %s169 = sadd.s32 %s168, 1
      %p172 = scmp.eq.s32.totalorder %s27, 3
      %p173 = scmp.ne.s32.totalorder %s168, %s170
      %p174 = scmp.eq.s32.totalorder %s27, 0
      %p175 = por %p173, %p174
      %p176 = scmp.ne.s32.totalorder %s168, %s170
      %p177 = scmp.eq.s32.totalorder %s32, 3
      %p178 = por %p176, %p177
      %p179 = scmp.ne.s32.totalorder %s170, %s171
      %p180 = scmp.eq.s32.totalorder %s32, 0
      %p181 = por %p179, %p180
      %p182 = scmp.ne.s32.totalorder %s170, %s171
      %p183 = scmp.eq.s32.totalorder %s33, 3
      %p184 = por %p182, %p183
      %p186 = scmp.ne.s32.totalorder %s171, %s185
      %p187 = scmp.eq.s32.totalorder %s33, 0
      %p188 = por %p186, %p187
      %s190 = sadd.s32 %s189, 1
      %p193 = scmp.eq.s32.totalorder %s27, 3
      %p194 = scmp.ne.s32.totalorder %s189, %s191
      %p195 = scmp.eq.s32.totalorder %s27, 0
      %p196 = por %p194, %p195
      %p197 = scmp.ne.s32.totalorder %s189, %s191
      %p198 = scmp.eq.s32.totalorder %s32, 3
      %p199 = por %p197, %p198
      %p200 = scmp.ne.s32.totalorder %s191, %s192
      %p201 = scmp.eq.s32.totalorder %s32, 0
      %p202 = por %p200, %p201
      %p203 = scmp.ne.s32.totalorder %s191, %s192
      %p204 = scmp.eq.s32.totalorder %s33, 3
      %p205 = por %p203, %p204
      %p207 = scmp.ne.s32.totalorder %s192, %s206
      %p208 = scmp.eq.s32.totalorder %s33, 0
      %p209 = por %p207, %p208
      %s211 = sadd.s32 %s210, 1
      %p214 = scmp.eq.s32.totalorder %s27, 3
      %p215 = scmp.ne.s32.totalorder %s210, %s212
      %p216 = scmp.eq.s32.totalorder %s27, 0
      %p217 = por %p215, %p216
      %p218 = scmp.ne.s32.totalorder %s210, %s212
      %p219 = scmp.eq.s32.totalorder %s32, 3
      %p220 = por %p218, %p219
      %p221 = scmp.ne.s32.totalorder %s212, %s213
      %p222 = scmp.eq.s32.totalorder %s32, 0
      %p223 = por %p221, %p222
      %p224 = scmp.ne.s32.totalorder %s212, %s213
      %p225 = scmp.eq.s32.totalorder %s33, 3
      %p226 = por %p224, %p225
      %p228 = scmp.ne.s32.totalorder %s213, %s227
      %p229 = scmp.eq.s32.totalorder %s33, 0
      %p230 = por %p228, %p229
      %s232 = sadd.s32 %s231, 1
      %p235 = scmp.eq.s32.totalorder %s27, 3
      %p236 = scmp.ne.s32.totalorder %s231, %s233
      %p237 = scmp.eq.s32.totalorder %s27, 0
      %p238 = por %p236, %p237
      %p239 = scmp.ne.s32.totalorder %s231, %s233
      %p240 = scmp.eq.s32.totalorder %s32, 3
      %p241 = por %p239, %p240
      %p242 = scmp.ne.s32.totalorder %s233, %s234
      %p243 = scmp.eq.s32.totalorder %s32, 0
      %p244 = por %p242, %p243
      %p245 = scmp.ne.s32.totalorder %s233, %s234
      %p246 = scmp.eq.s32.totalorder %s33, 3
      %p247 = por %p245, %p246
      %p249 = scmp.ne.s32.totalorder %s234, %s248
      %p250 = scmp.eq.s32.totalorder %s33, 0
      %p251 = por %p249, %p250
      %s253 = sadd.s32 %s252, 1
      %p256 = scmp.eq.s32.totalorder %s27, 3
      %p257 = scmp.ne.s32.totalorder %s252, %s254
      %p258 = scmp.eq.s32.totalorder %s27, 0
      %p259 = por %p257, %p258
      %p260 = scmp.ne.s32.totalorder %s252, %s254
      %p261 = scmp.eq.s32.totalorder %s32, 3
      %p262 = por %p260, %p261
      %p263 = scmp.ne.s32.totalorder %s254, %s255
      %p264 = scmp.eq.s32.totalorder %s32, 0
      %p265 = por %p263, %p264
      %p266 = scmp.ne.s32.totalorder %s254, %s255
      %p267 = scmp.eq.s32.totalorder %s33, 3
      %p268 = por %p266, %p267
      %p270 = scmp.ne.s32.totalorder %s255, %s269
      %p271 = scmp.eq.s32.totalorder %s33, 0
      %p272 = por %p270, %p271
      %s274 = sadd.s32 %s273, 1
      %p277 = scmp.eq.s32.totalorder %s27, 3
      %p278 = scmp.ne.s32.totalorder %s273, %s275
      %p279 = scmp.eq.s32.totalorder %s27, 0
      %p280 = por %p278, %p279
      %p281 = scmp.ne.s32.totalorder %s273, %s275
      %p282 = scmp.eq.s32.totalorder %s32, 3
      %p283 = por %p281, %p282
      %p284 = scmp.ne.s32.totalorder %s275, %s276
      %p285 = scmp.eq.s32.totalorder %s32, 0
      %p286 = por %p284, %p285
      %p287 = scmp.ne.s32.totalorder %s275, %s276
      %p288 = scmp.eq.s32.totalorder %s33, 3
      %p289 = por %p287, %p288
      %p291 = scmp.ne.s32.totalorder %s276, %s290
      %p292 = scmp.eq.s32.totalorder %s33, 0
      %p293 = por %p291, %p292
      %s295 = sadd.s32 %s294, 1
      %p298 = scmp.eq.s32.totalorder %s27, 3
      %p299 = scmp.ne.s32.totalorder %s294, %s296
      %p300 = scmp.eq.s32.totalorder %s27, 0
      %p301 = por %p299, %p300
      %p302 = scmp.ne.s32.totalorder %s294, %s296
      %p303 = scmp.eq.s32.totalorder %s32, 3
      %p304 = por %p302, %p303
      %p305 = scmp.ne.s32.totalorder %s296, %s297
      %p306 = scmp.eq.s32.totalorder %s32, 0
      %p307 = por %p305, %p306
      %p308 = scmp.ne.s32.totalorder %s296, %s297
      %p309 = scmp.eq.s32.totalorder %s33, 3
      %p310 = por %p308, %p309
      %p312 = scmp.ne.s32.totalorder %s297, %s311
      %p313 = scmp.eq.s32.totalorder %s33, 0
      %p314 = por %p312, %p313
      %s316 = sadd.s32 %s315, 1
      %p319 = scmp.eq.s32.totalorder %s27, 3
      %p320 = scmp.ne.s32.totalorder %s315, %s317
      %p321 = scmp.eq.s32.totalorder %s27, 0
      %p322 = por %p320, %p321
      %p323 = scmp.ne.s32.totalorder %s315, %s317
      %p324 = scmp.eq.s32.totalorder %s32, 3
      %p325 = por %p323, %p324
      %p326 = scmp.ne.s32.totalorder %s317, %s318
      %p327 = scmp.eq.s32.totalorder %s32, 0
      %p328 = por %p326, %p327
      %p329 = scmp.ne.s32.totalorder %s317, %s318
      %p330 = scmp.eq.s32.totalorder %s33, 3
      %p331 = por %p329, %p330
      %p333 = scmp.ne.s32.totalorder %s318, %s332
      %p334 = scmp.eq.s32.totalorder %s33, 0
      %p335 = por %p333, %p334
      %s336 = ssub.s32 %s34, %s46
      %s337 = ssub.s32 %s35, %s42
      %s338 = sor.u32 %s336, %s337
      %p339 = scmp.eq.s32.totalorder %s338, 0
      %s341 = sadd.s32 %s340, 1
      %s342 = scalar_select %p339, %s340, %s341
      %p345 = pneg %p339
      %p346 = scmp.eq.s32.totalorder %s27, 3
      %p347 = por %p345, %p346
      %p348 = scmp.ne.s32.totalorder %s340, %s343
      %p349 = scmp.eq.s32.totalorder %s27, 0
      %p350 = por %p348, %p349
      %p351 = scmp.ne.s32.totalorder %s340, %s343
      %p352 = scmp.eq.s32.totalorder %s32, 3
      %p353 = por %p351, %p352
      %p354 = scmp.ne.s32.totalorder %s343, %s344
      %p355 = scmp.eq.s32.totalorder %s32, 0
      %p356 = por %p354, %p355
      %p357 = scmp.ne.s32.totalorder %s343, %s344
      %p358 = scmp.eq.s32.totalorder %s33, 3
      %p359 = por %p357, %p358
      %p361 = scmp.ne.s32.totalorder %s344, %s360
      %p362 = scmp.eq.s32.totalorder %s33, 0
      %p363 = por %p361, %p362
      %p364 = scmp.le.s32.totalorder 1, %s27
      %p365 = scmp.lt.s32.totalorder %s27, 5
      %p366 = pnand %p364, %p365
      %p367 = pneg %p366
      // Predicated region
      $region9: #{bottleneck_forward_nhwc.1} parent=5 // pred_check
        _
      $region10: #{bottleneck_forward_nhwc.1} parent=5 // pred_check_branch
        %369 = sbr.rel (%p366) target = $region12
      $region11: #{bottleneck_forward_nhwc.1} parent=5 // pred_region
        %s370 = ssub.s32 %s27, 1
        // Predicated region
        $region13: #{bottleneck_forward_nhwc.1} parent=11 // pred_check
          %p371 = pneg %p160
        $region14: #{bottleneck_forward_nhwc.1} parent=11 // pred_check_branch
          %373 = sbr.rel (%p371) target = $region16
        $region15: #{bottleneck_forward_nhwc.1} parent=11 // pred_region
          _
        $region16: #{bottleneck_forward_nhwc.1} parent=11 // pred_fallthru
          _
        // Predicated region
        $region17: #{bottleneck_forward_nhwc.1} parent=11 // pred_check
          %p374 = pneg %p181
        $region18: #{bottleneck_forward_nhwc.1} parent=11 // pred_check_branch
          %376 = sbr.rel (%p374) target = $region20
        $region19: #{bottleneck_forward_nhwc.1} parent=11 // pred_region
          _
        $region20: #{bottleneck_forward_nhwc.1} parent=11 // pred_fallthru
          _
        // Predicated region
        $region21: #{bottleneck_forward_nhwc.1} parent=11 // pred_check
          %p377 = pneg %p202
        $region22: #{bottleneck_forward_nhwc.1} parent=11 // pred_check_branch
          %379 = sbr.rel (%p377) target = $region24
        $region23: #{bottleneck_forward_nhwc.1} parent=11 // pred_region
          _
        $region24: #{bottleneck_forward_nhwc.1} parent=11 // pred_fallthru
          _
        // Predicated region
        $region25: #{bottleneck_forward_nhwc.1} parent=11 // pred_check
          %p380 = pneg %p223
        $region26: #{bottleneck_forward_nhwc.1} parent=11 // pred_check_branch
          %382 = sbr.rel (%p380) target = $region28
        $region27: #{bottleneck_forward_nhwc.1} parent=11 // pred_region
          _
        $region28: #{bottleneck_forward_nhwc.1} parent=11 // pred_fallthru
          _
        // Predicated region
        $region29: #{bottleneck_forward_nhwc.1} parent=11 // pred_check
          %p383 = pneg %p244
        $region30: #{bottleneck_forward_nhwc.1} parent=11 // pred_check_branch
          %385 = sbr.rel (%p383) target = $region32
        $region31: #{bottleneck_forward_nhwc.1} parent=11 // pred_region
          _
        $region32: #{bottleneck_forward_nhwc.1} parent=11 // pred_fallthru
          _
        // Predicated region
        $region33: #{bottleneck_forward_nhwc.1} parent=11 // pred_check
          %p386 = pneg %p265
        $region34: #{bottleneck_forward_nhwc.1} parent=11 // pred_check_branch
          %388 = sbr.rel (%p386) target = $region36
        $region35: #{bottleneck_forward_nhwc.1} parent=11 // pred_region
          _
        $region36: #{bottleneck_forward_nhwc.1} parent=11 // pred_fallthru
          _
        // Predicated region
        $region37: #{bottleneck_forward_nhwc.1} parent=11 // pred_check
          %p389 = pneg %p286
        $region38: #{bottleneck_forward_nhwc.1} parent=11 // pred_check_branch
          %391 = sbr.rel (%p389) target = $region40
        $region39: #{bottleneck_forward_nhwc.1} parent=11 // pred_region
          _
        $region40: #{bottleneck_forward_nhwc.1} parent=11 // pred_fallthru
          _
        // Predicated region
        $region41: #{bottleneck_forward_nhwc.1} parent=11 // pred_check
          %p392 = pneg %p307
        $region42: #{bottleneck_forward_nhwc.1} parent=11 // pred_check_branch
          %394 = sbr.rel (%p392) target = $region44
        $region43: #{bottleneck_forward_nhwc.1} parent=11 // pred_region
          _
        $region44: #{bottleneck_forward_nhwc.1} parent=11 // pred_fallthru
          _
        // Predicated region
        $region45: #{bottleneck_forward_nhwc.1} parent=11 // pred_check
          %p395 = pneg %p328
        $region46: #{bottleneck_forward_nhwc.1} parent=11 // pred_check_branch
          %397 = sbr.rel (%p395) target = $region48
        $region47: #{bottleneck_forward_nhwc.1} parent=11 // pred_region
          _
        $region48: #{bottleneck_forward_nhwc.1} parent=11 // pred_fallthru
          _
      $region12: #{bottleneck_forward_nhwc.1} parent=5 // pred_fallthru
        _
      %p398 = scmp.lt.s32.totalorder %s27, 4
      // Predicated region
      $region49: #{bottleneck_forward_nhwc.1} parent=5 // pred_check
        %p399 = pneg %p398
      $region50: #{bottleneck_forward_nhwc.1} parent=5 // pred_check_branch
        %401 = sbr.rel (%p399) target = $region52
      $region51: #{bottleneck_forward_nhwc.1} parent=5 // pred_region
        // Predicated region
        $region53: #{bottleneck_forward_nhwc.1} parent=51 // pred_check
          %p402 = pneg %p61
        $region54: #{bottleneck_forward_nhwc.1} parent=51 // pred_check_branch
          %404 = sbr.rel (%p402) target = $region56
        $region55: #{bottleneck_forward_nhwc.1} parent=51 // pred_region
          %s405 = sand.u32 %s51, 1
          %s406 = scalar_lea.sflag [#allocation4], %s405
          %s407 = sand.u32 %s51, 1
          %s408 = smul.addr %s407, 128
          %s409 = scalar_lea.vmem [#allocation3], %s408
          %s410 = smul.u32 8, %s35
          %s412 = ssub.s32 2048, 2048
          %413 = vsyncadd %s406, %s412
          %s414 = smul.addr %s410, 2
          %s415 = smul.addr %s34, 32
          %s416 = sadd.s32 %s414, %s415
          %s417 = smul.addr %s416, 128
          %s418 = scalar_lea.hbm %s0, %s417
          %s419 = sshll.u32 %s409, 4
          %s420 = int_to_ptr.vmem [resolvable:$true] %s419
          %425 = dma.hbm_to_vmem [thread:$0]  %s418, 2048, %s420, %s406, 128, 128, 8
        $region56: #{bottleneck_forward_nhwc.1} parent=51 // pred_fallthru
          _
        // Predicated region
        $region57: #{bottleneck_forward_nhwc.1} parent=51 // pred_check
          %p426 = pneg %p97
        $region58: #{bottleneck_forward_nhwc.1} parent=51 // pred_check_branch
          %428 = sbr.rel (%p426) target = $region60
        $region59: #{bottleneck_forward_nhwc.1} parent=51 // pred_region
          %s429 = sand.u32 %s27, 1
          %s430 = scalar_lea.sflag [#allocation7], %s429
          %s431 = sand.u32 %s87, 1
          %s432 = smul.addr %s431, 16
          %s433 = scalar_lea.vmem [#allocation6], %s432
          %s434 = smul.u32 %s35, 8
          %s435 = ssub.s32 %s434, 1
          %p436 = scmp.gt.s32.totalorder %s435, 0
          %s437 = scalar_select %p436, %s435, 0
          %s439 = ssub.s32 256, 256
          %440 = vsyncadd %s430, %s439
          %s441 = smul.addr %s437, 2
          %s442 = smul.addr %s34, 32
          %s443 = sadd.s32 %s441, %s442
          %s444 = smul.addr %s443, 128
          %s445 = scalar_lea.hbm %s1, %s444
          %s446 = sshll.u32 %s433, 4
          %s447 = int_to_ptr.vmem [resolvable:$true] %s446
          %452 = dma.hbm_to_vmem [thread:$0]  %s445, 256, %s447, %s430, 128, 128, 8
        $region60: #{bottleneck_forward_nhwc.1} parent=51 // pred_fallthru
          _
        // Predicated region
        $region61: #{bottleneck_forward_nhwc.1} parent=51 // pred_check
          %p453 = pneg %p133
        $region62: #{bottleneck_forward_nhwc.1} parent=51 // pred_check_branch
          %455 = sbr.rel (%p453) target = $region64
        $region63: #{bottleneck_forward_nhwc.1} parent=51 // pred_region
          %s456 = sand.u32 %s27, 1
          %s457 = scalar_lea.sflag [#allocation7], %s456
          %s458 = sand.u32 %s123, 1
          %s459 = smul.addr %s458, 16
          %s460 = scalar_lea.vmem [#allocation8], %s459
          %s461 = smul.u32 %s35, 8
          %s462 = sadd.s32 %s461, 8
          %p463 = scmp.lt.s32.totalorder %s462, 15
          %s464 = scalar_select %p463, %s462, 15
          %s466 = ssub.s32 256, 256
          %467 = vsyncadd %s457, %s466
          %s468 = smul.addr %s464, 2
          %s469 = smul.addr %s34, 32
          %s470 = sadd.s32 %s468, %s469
          %s471 = smul.addr %s470, 128
          %s472 = scalar_lea.hbm %s2, %s471
          %s473 = sshll.u32 %s460, 4
          %s474 = int_to_ptr.vmem [resolvable:$true] %s473
          %479 = dma.hbm_to_vmem [thread:$0]  %s472, 256, %s474, %s457, 128, 128, 8
        $region64: #{bottleneck_forward_nhwc.1} parent=51 // pred_fallthru
          _
      $region52: #{bottleneck_forward_nhwc.1} parent=5 // pred_fallthru
        _
      %p480 = scmp.le.s32.totalorder 1, %s27
      %p481 = scmp.lt.s32.totalorder %s27, 5
      %p482 = pnand %p480, %p481
      %p483 = pneg %p482
      // Predicated region
      $region65: #{bottleneck_forward_nhwc.1} parent=5 // pred_check
        _
      $region66: #{bottleneck_forward_nhwc.1} parent=5 // pred_check_branch
        %485 = sbr.rel (%p482) target = $region68
      $region67: #{bottleneck_forward_nhwc.1} parent=5 // pred_region
        %s486 = ssub.s32 %s27, 1
        %s487 = sand.u32 %s54, 1
        %s488 = scalar_lea.sflag [#allocation4], %s487
        %s489 = sand.u32 %s54, 1
        %s490 = smul.addr %s489, 128
        %s491 = scalar_lea.vmem [#allocation3], %s490
        // Predicated region
        $region69: #{bottleneck_forward_nhwc.1} parent=67 // pred_check
          %p492 = pneg %p67
        $region70: #{bottleneck_forward_nhwc.1} parent=67 // pred_check_branch
          %494 = sbr.rel (%p492) target = $region72
        $region71: #{bottleneck_forward_nhwc.1} parent=67 // pred_region
          %495 = dma.done %s488, 2048
        $region72: #{bottleneck_forward_nhwc.1} parent=67 // pred_fallthru
          _
        %s496 = sand.u32 %s32, 1
        %s497 = scalar_lea.sflag [#allocation7], %s496
        %s498 = sand.u32 %s90, 1
        %s499 = smul.addr %s498, 16
        %s500 = scalar_lea.vmem [#allocation6], %s499
        // Predicated region
        $region73: #{bottleneck_forward_nhwc.1} parent=67 // pred_check
          %p501 = pneg %p103
        $region74: #{bottleneck_forward_nhwc.1} parent=67 // pred_check_branch
          %503 = sbr.rel (%p501) target = $region76
        $region75: #{bottleneck_forward_nhwc.1} parent=67 // pred_region
          %504 = dma.done %s497, 256
        $region76: #{bottleneck_forward_nhwc.1} parent=67 // pred_fallthru
          _
        %s505 = sand.u32 %s32, 1
        %s506 = scalar_lea.sflag [#allocation7], %s505
        %s507 = sand.u32 %s126, 1
        %s508 = smul.addr %s507, 16
        %s509 = scalar_lea.vmem [#allocation8], %s508
        // Predicated region
        $region77: #{bottleneck_forward_nhwc.1} parent=67 // pred_check
          %p510 = pneg %p139
        $region78: #{bottleneck_forward_nhwc.1} parent=67 // pred_check_branch
          %512 = sbr.rel (%p510) target = $region80
        $region79: #{bottleneck_forward_nhwc.1} parent=67 // pred_region
          %513 = dma.done %s506, 256
        $region80: #{bottleneck_forward_nhwc.1} parent=67 // pred_fallthru
          _
        %s514 = sand.u32 %s54, 1
        %s515 = scalar_lea.sflag [#allocation4], %s514
        %s516 = sand.u32 %s54, 1
        %s517 = smul.addr %s516, 128
        %s518 = scalar_lea.vmem [#allocation3], %s517
        %p519 = pneg %p67
        %p520 = pneg %p64
        %s521 = sand.u32 %s32, 1
        %s522 = scalar_lea.sflag [#allocation7], %s521
        %s523 = sand.u32 %s90, 1
        %s524 = smul.addr %s523, 16
        %s525 = scalar_lea.vmem [#allocation6], %s524
        %p526 = pneg %p103
        %p527 = pneg %p100
        %s528 = sand.u32 %s32, 1
        %s529 = scalar_lea.sflag [#allocation7], %s528
        %s530 = sand.u32 %s126, 1
        %s531 = smul.addr %s530, 16
        %s532 = scalar_lea.vmem [#allocation8], %s531
        %p533 = pneg %p139
        %p534 = pneg %p136
        %p535 = pneg %p160
        %p536 = pneg %p157
        %p537 = pneg %p181
        %p538 = pneg %p178
        %p539 = pneg %p202
        %p540 = pneg %p199
        %p541 = pneg %p223
        %p542 = pneg %p220
        %p543 = pneg %p244
        %p544 = pneg %p241
        %p545 = pneg %p265
        %p546 = pneg %p262
        %p547 = pneg %p286
        %p548 = pneg %p283
        %p549 = pneg %p307
        %p550 = pneg %p304
        %p551 = pneg %p328
        %p552 = pneg %p325
        %p553 = pneg %p356
        %p554 = pneg %p353
        %s555 = sand.u32 %s343, 1
        %s556 = scalar_lea.sflag [#allocation5], %s555
        %s557 = sand.u32 %s343, 1
        %s558 = smul.addr %s557, 128
        %s559 = scalar_lea.vmem [#allocation9], %s558
        %s560 = smul.u32 8, %s37
        %s561 = smul.u32 %s37, 8
        %s562 = ssub.s32 %s561, 1
        %p563 = scmp.gt.s32.totalorder %s562, 0
        %s564 = scalar_select %p563, %s562, 0
        %s565 = smul.u32 %s37, 8
        %s566 = sadd.s32 %s565, 8
        %p567 = scmp.lt.s32.totalorder %s566, 15
        %s568 = scalar_select %p567, %s566, 15
        %s569 = smul.u32 8, %s37
        %v571 = vld [vmem:[%s500] sm:$0xff]
        %v572 = vld [vmem:[%s500 + $0x8] sm:$0xff]
        %v573 = vld [vmem:[%s491] sm:$0xff]
        %v574 = vld [vmem:[%s491 + $0x8] sm:$0xff]
        %v575 = vld [vmem:[%s491 + $0x10] sm:$0xff]
        %v576 = vld [vmem:[%s491 + $0x18] sm:$0xff]
        %v577 = vld [vmem:[%s491 + $0x20] sm:$0xff]
        %v578 = vld [vmem:[%s491 + $0x28] sm:$0xff]
        %v579 = vld [vmem:[%s491 + $0x30] sm:$0xff]
        %v580 = vld [vmem:[%s491 + $0x38] sm:$0xff]
        %v581 = vld [vmem:[%s491 + $0x40] sm:$0xff]
        %v582 = vld [vmem:[%s491 + $0x48] sm:$0xff]
        %v583 = vld [vmem:[%s491 + $0x50] sm:$0xff]
        %v584 = vld [vmem:[%s491 + $0x58] sm:$0xff]
        %v585 = vld [vmem:[%s491 + $0x60] sm:$0xff]
        %v586 = vld [vmem:[%s491 + $0x68] sm:$0xff]
        %v587 = vld [vmem:[%s491 + $0x70] sm:$0xff]
        %v588 = vld [vmem:[%s491 + $0x78] sm:$0xff]
        %v589 = vld [vmem:[%s509] sm:$0xff]
        %v590 = vld [vmem:[%s509 + $0x8] sm:$0xff]
        %v591 = vpack.c.bf16 %v572, %v571
        %v592 = vpack.c.bf16 %v574, %v573
        %v593 = vpack.c.bf16 %v576, %v575
        %v594 = vpack.c.bf16 %v578, %v577
        %v595 = vpack.c.bf16 %v580, %v579
        %v596 = vpack.c.bf16 %v582, %v581
        %v597 = vpack.c.bf16 %v584, %v583
        %v598 = vpack.c.bf16 %v586, %v585
        %v599 = vpack.c.bf16 %v588, %v587
        %v600 = vpack.c.bf16 %v590, %v589
        %v601 = vld [vmem:[%s3] sm:$0xf]
        %v602 = vld [vmem:[%s3 + $0x4] sm:$0xf]
        %v603 = vld [vmem:[%s3 + $0x8] sm:$0xf]
        %v604 = vld [vmem:[%s3 + $0xc] sm:$0xf]
        %v609 = vunpack.c.l.b16 %v601
        %v610 = vunpack.c.l.b16 %v602
        %v611 = vunpack.c.l.b16 %v603
        %v612 = vunpack.c.l.b16 %v604
        %v613 = vpack.c.b16 %v610, %v609
        %v614 = vpack.c.b16 %v612, %v611
        %vm617 = vcmask 261120
        %v619 = vsel %vm617, %v591, 0
        %v622 = vsel %vm617, %v592, 0
        %v625 = vsel %vm617, %v593, 0
        %v628 = vsel %vm617, %v594, 0
        %v631 = vsel %vm617, %v595, 0
        %v634 = vsel %vm617, %v596, 0
        %v637 = vsel %vm617, %v597, 0
        %v640 = vsel %vm617, %v598, 0
        %v643 = vsel %vm617, %v599, 0
        %v646 = vsel %vm617, %v600, 0
        %648 = vmatprep.subr.bf16.mxu0 0
        %649 = vmatpush1.bf16.msra.mxu0 %v613
        %650 = vmatprep.subr.bf16.mxu0 0
        %651 = vmatpush1.bf16.msra.mxu0 %v614
        %652 = vmatprep.subr.bf16.mxu0 0
        %653 = vmatpush1.bf16.msra.mxu0 0
        %654 = vmatprep.subr.bf16.mxu0 0
        %655 = vmatpush1.bf16.msra.mxu0 0
        %656 = vmatprep.subr.bf16.mxu0 0
        %657 = vmatpush1.bf16.msra.mxu0 0
        %658 = vmatprep.subr.bf16.mxu0 0
        %659 = vmatpush1.bf16.msra.mxu0 0
        %660 = vmatprep.subr.bf16.mxu0 0
        %661 = vmatpush1.bf16.msra.mxu0 0
        %662 = vmatprep.subr.bf16.mxu0 0
        %663 = vmatpush1.bf16.msra.mxu0 0
        %664 = vmatprep.subr.bf16.mxu0 0
        %665 = vmatpush1.bf16.msra.mxu0 0
        %666 = vmatprep.subr.bf16.mxu0 0
        %667 = vmatpush1.bf16.msra.mxu0 0
        %668 = vmatprep.subr.bf16.mxu0 0
        %669 = vmatpush1.bf16.msra.mxu0 0
        %670 = vmatprep.subr.bf16.mxu0 0
        %671 = vmatpush1.bf16.msra.mxu0 0
        %672 = vmatprep.subr.bf16.mxu0 0
        %673 = vmatpush1.bf16.msra.mxu0 0
        %674 = vmatprep.subr.bf16.mxu0 0
        %675 = vmatpush1.bf16.msra.mxu0 0
        %676 = vmatprep.subr.bf16.mxu0 0
        %677 = vmatpush1.bf16.msra.mxu0 0
        %678 = vmatprep.subr.bf16.mxu0 0
        %679 = vmatpush1.bf16.msra.mxu0 0
        %680 = vmatprep.mubr.bf16.mxu0 0
        %681 = vmatmul.mubr.bf16.gmra.mrb[0].mxu0 %v619
        %v682 = vpop.f32.mrb[0].mxu0
        %v683 = vadd.f32 0.0, %v682
        %v684 = vpop.f32.mrb[0].mxu0
        %v685 = vpop.f32.mrb[0].mxu0
        %v686 = vadd.f32 0.0, %v685
        %v687 = vpop.f32.mrb[0].mxu0
        %688 = vmatprep.mubr.bf16.mxu0 0
        %689 = vmatmul.mubr.bf16.gmra.mrb[0].mxu0 %v622
        %v690 = vpop.f32.mrb[0].mxu0
        %v691 = vadd.f32 0.0, %v690
        %v692 = vpop.f32.mrb[0].mxu0
        %v693 = vpop.f32.mrb[0].mxu0
        %v694 = vadd.f32 0.0, %v693
        %v695 = vpop.f32.mrb[0].mxu0
        %696 = vmatprep.mubr.bf16.mxu0 0
        %697 = vmatmul.mubr.bf16.gmra.mrb[0].mxu0 %v625
        %v698 = vpop.f32.mrb[0].mxu0
        %v699 = vadd.f32 0.0, %v698
        %v700 = vpop.f32.mrb[0].mxu0
        %v701 = vpop.f32.mrb[0].mxu0
        %v702 = vadd.f32 0.0, %v701
        %v703 = vpop.f32.mrb[0].mxu0
        %704 = vmatprep.mubr.bf16.mxu0 0
        %705 = vmatmul.mubr.bf16.gmra.mrb[0].mxu0 %v628
        %v706 = vpop.f32.mrb[0].mxu0
        %v707 = vadd.f32 0.0, %v706
        %v708 = vpop.f32.mrb[0].mxu0
        %v709 = vpop.f32.mrb[0].mxu0
        %v710 = vadd.f32 0.0, %v709
        %v711 = vpop.f32.mrb[0].mxu0
        %712 = vmatprep.mubr.bf16.mxu0 0
        %713 = vmatmul.mubr.bf16.gmra.mrb[0].mxu0 %v631
        %v714 = vpop.f32.mrb[0].mxu0
        %v715 = vadd.f32 0.0, %v714
        %v716 = vpop.f32.mrb[0].mxu0
        %v717 = vpop.f32.mrb[0].mxu0
        %v718 = vadd.f32 0.0, %v717
        %v719 = vpop.f32.mrb[0].mxu0
        %720 = vmatprep.mubr.bf16.mxu0 0
        %721 = vmatmul.mubr.bf16.gmra.mrb[0].mxu0 %v634
        %v722 = vpop.f32.mrb[0].mxu0
        %v723 = vadd.f32 0.0, %v722
        %v724 = vpop.f32.mrb[0].mxu0
        %v725 = vpop.f32.mrb[0].mxu0
        %v726 = vadd.f32 0.0, %v725
        %v727 = vpop.f32.mrb[0].mxu0
        %728 = vmatprep.mubr.bf16.mxu0 0
        %729 = vmatmul.mubr.bf16.gmra.mrb[0].mxu0 %v637
        %v730 = vpop.f32.mrb[0].mxu0
        %v731 = vadd.f32 0.0, %v730
        %v732 = vpop.f32.mrb[0].mxu0
        %v733 = vpop.f32.mrb[0].mxu0
        %v734 = vadd.f32 0.0, %v733
        %v735 = vpop.f32.mrb[0].mxu0
        %736 = vmatprep.mubr.bf16.mxu0 0
        %737 = vmatmul.mubr.bf16.gmra.mrb[0].mxu0 %v640
        %v738 = vpop.f32.mrb[0].mxu0
        %v739 = vadd.f32 0.0, %v738
        %v740 = vpop.f32.mrb[0].mxu0
        %v741 = vpop.f32.mrb[0].mxu0
        %v742 = vadd.f32 0.0, %v741
        %v743 = vpop.f32.mrb[0].mxu0
        %744 = vmatprep.mubr.bf16.mxu0 0
        %745 = vmatmul.mubr.bf16.gmra.mrb[0].mxu0 %v643
        %v746 = vpop.f32.mrb[0].mxu0
        %v747 = vadd.f32 0.0, %v746
        %v748 = vpop.f32.mrb[0].mxu0
        %v749 = vpop.f32.mrb[0].mxu0
        %v750 = vadd.f32 0.0, %v749
        %v751 = vpop.f32.mrb[0].mxu0
        %752 = vmatprep.mubr.bf16.mxu0 0
        %753 = vmatmul.mubr.bf16.gmra.mrb[0].mxu0 %v646
        %v754 = vpop.f32.mrb[0].mxu0
        %v755 = vadd.f32 0.0, %v754
        %v756 = vpop.f32.mrb[0].mxu0
        %v757 = vpop.f32.mrb[0].mxu0
        %v758 = vadd.f32 0.0, %v757
        %v759 = vpop.f32.mrb[0].mxu0
        %760 = vdwg.mxu0
        %v761 = vld [vmem:[%s4] sm:$0x1]
        %v763 = vlaneseq
        %v764 = vshrl.u32 %v763, 7
        %v765 = vsub.s32 0, %v764
        %v766 = vrot.slane %v761, %v765
        %v768 = vmul.f32 %v683, %v766
        %v769 = vmul.f32 %v686, %v766
        %v770 = vmul.f32 %v691, %v766
        %v771 = vmul.f32 %v694, %v766
        %v772 = vmul.f32 %v699, %v766
        %v773 = vmul.f32 %v702, %v766
        %v774 = vmul.f32 %v707, %v766
        %v775 = vmul.f32 %v710, %v766
        %v776 = vmul.f32 %v715, %v766
        %v777 = vmul.f32 %v718, %v766
        %v778 = vmul.f32 %v723, %v766
        %v779 = vmul.f32 %v726, %v766
        %v780 = vmul.f32 %v731, %v766
        %v781 = vmul.f32 %v734, %v766
        %v782 = vmul.f32 %v739, %v766
        %v783 = vmul.f32 %v742, %v766
        %v784 = vmul.f32 %v747, %v766
        %v785 = vmul.f32 %v750, %v766
        %v786 = vmul.f32 %v755, %v766
        %v787 = vmul.f32 %v758, %v766
        %v788 = vld [vmem:[%s5] sm:$0x1]
        %v790 = vlaneseq
        %v791 = vshrl.u32 %v790, 7
        %v792 = vsub.s32 0, %v791
        %v793 = vrot.slane %v788, %v792
        %v795 = vadd.f32 %v768, %v793
        %v796 = vadd.f32 %v769, %v793
        %v797 = vadd.f32 %v770, %v793
        %v798 = vadd.f32 %v771, %v793
        %v799 = vadd.f32 %v772, %v793
        %v800 = vadd.f32 %v773, %v793
        %v801 = vadd.f32 %v774, %v793
        %v802 = vadd.f32 %v775, %v793
        %v803 = vadd.f32 %v776, %v793
        %v804 = vadd.f32 %v777, %v793
        %v805 = vadd.f32 %v778, %v793
        %v806 = vadd.f32 %v779, %v793
        %v807 = vadd.f32 %v780, %v793
        %v808 = vadd.f32 %v781, %v793
        %v809 = vadd.f32 %v782, %v793
        %v810 = vadd.f32 %v783, %v793
        %v811 = vadd.f32 %v784, %v793
        %v812 = vadd.f32 %v785, %v793
        %v813 = vadd.f32 %v786, %v793
        %v814 = vadd.f32 %v787, %v793
        %v815 = vmax.f32 %v795, 0.0
        %v816 = vmax.f32 %v796, 0.0
        %v817 = vmax.f32 %v797, 0.0
        %v818 = vmax.f32 %v798, 0.0
        %v819 = vmax.f32 %v799, 0.0
        %v820 = vmax.f32 %v800, 0.0
        %v821 = vmax.f32 %v801, 0.0
        %v822 = vmax.f32 %v802, 0.0
        %v823 = vmax.f32 %v803, 0.0
        %v824 = vmax.f32 %v804, 0.0
        %v825 = vmax.f32 %v805, 0.0
        %v826 = vmax.f32 %v806, 0.0
        %v827 = vmax.f32 %v807, 0.0
        %v828 = vmax.f32 %v808, 0.0
        %v829 = vmax.f32 %v809, 0.0
        %v830 = vmax.f32 %v810, 0.0
        %v831 = vmax.f32 %v811, 0.0
        %v832 = vmax.f32 %v812, 0.0
        %v833 = vmax.f32 %v813, 0.0
        %v834 = vmax.f32 %v814, 0.0
        %vm835 = vcmask 64512
        %836 = vst.msk [vmem:[#allocation2 + $0x1] sm:$0xff] %vm835, %v815
        %837 = vst.msk [vmem:[#allocation2 + $0x9] sm:$0xff] %vm835, %v816
        %838 = vst.msk [vmem:[#allocation2 + $0x19] sm:$0xff] %vm835, %v817
        %839 = vst.msk [vmem:[#allocation2 + $0x21] sm:$0xff] %vm835, %v818
        %840 = vst.msk [vmem:[#allocation2 + $0x31] sm:$0xff] %vm835, %v819
        %841 = vst.msk [vmem:[#allocation2 + $0x39] sm:$0xff] %vm835, %v820
        %842 = vst.msk [vmem:[#allocation2 + $0x49] sm:$0xff] %vm835, %v821
        %843 = vst.msk [vmem:[#allocation2 + $0x51] sm:$0xff] %vm835, %v822
        %844 = vst.msk [vmem:[#allocation2 + $0x61] sm:$0xff] %vm835, %v823
        %845 = vst.msk [vmem:[#allocation2 + $0x69] sm:$0xff] %vm835, %v824
        %846 = vst.msk [vmem:[#allocation2 + $0x79] sm:$0xff] %vm835, %v825
        %847 = vst.msk [vmem:[#allocation2 + $0x81] sm:$0xff] %vm835, %v826
        %848 = vst.msk [vmem:[#allocation2 + $0x91] sm:$0xff] %vm835, %v827
        %849 = vst.msk [vmem:[#allocation2 + $0x99] sm:$0xff] %vm835, %v828
        %850 = vst.msk [vmem:[#allocation2 + $0xa9] sm:$0xff] %vm835, %v829
        %851 = vst.msk [vmem:[#allocation2 + $0xb1] sm:$0xff] %vm835, %v830
        %852 = vst.msk [vmem:[#allocation2 + $0xc1] sm:$0xff] %vm835, %v831
        %853 = vst.msk [vmem:[#allocation2 + $0xc9] sm:$0xff] %vm835, %v832
        %854 = vst.msk [vmem:[#allocation2 + $0xd9] sm:$0xff] %vm835, %v833
        %855 = vst.msk [vmem:[#allocation2 + $0xe1] sm:$0xff] %vm835, %v834
        %vm856 = vcmask 57344
        %857 = vst.msk [vmem:[#allocation2] sm:$0x1] %vm856, 0.0
        %858 = vst.msk [vmem:[#allocation2 + $0x18] sm:$0x1] %vm856, 0.0
        %859 = vst.msk [vmem:[#allocation2 + $0x30] sm:$0x1] %vm856, 0.0
        %860 = vst.msk [vmem:[#allocation2 + $0x48] sm:$0x1] %vm856, 0.0
        %861 = vst.msk [vmem:[#allocation2 + $0x60] sm:$0x1] %vm856, 0.0
        %862 = vst.msk [vmem:[#allocation2 + $0x78] sm:$0x1] %vm856, 0.0
        %863 = vst.msk [vmem:[#allocation2 + $0x90] sm:$0x1] %vm856, 0.0
        %864 = vst.msk [vmem:[#allocation2 + $0xa8] sm:$0x1] %vm856, 0.0
        %865 = vst.msk [vmem:[#allocation2 + $0xc0] sm:$0x1] %vm856, 0.0
        %866 = vst.msk [vmem:[#allocation2 + $0xd8] sm:$0x1] %vm856, 0.0
        %867 = vst.msk [vmem:[#allocation2 + $0x11] sm:$0x1] %vm856, 0.0
        %868 = vst.msk [vmem:[#allocation2 + $0x29] sm:$0x1] %vm856, 0.0
        %869 = vst.msk [vmem:[#allocation2 + $0x41] sm:$0x1] %vm856, 0.0
        %870 = vst.msk [vmem:[#allocation2 + $0x59] sm:$0x1] %vm856, 0.0
        %871 = vst.msk [vmem:[#allocation2 + $0x71] sm:$0x1] %vm856, 0.0
        %872 = vst.msk [vmem:[#allocation2 + $0x89] sm:$0x1] %vm856, 0.0
        %873 = vst.msk [vmem:[#allocation2 + $0xa1] sm:$0x1] %vm856, 0.0
        %874 = vst.msk [vmem:[#allocation2 + $0xb9] sm:$0x1] %vm856, 0.0
        %875 = vst.msk [vmem:[#allocation2 + $0xd1] sm:$0x1] %vm856, 0.0
        %876 = vst.msk [vmem:[#allocation2 + $0xe9] sm:$0x1] %vm856, 0.0
        %p877 = scmp.eq.s32.totalorder %s37, 0
        // Predicated region
        $region81: #{bottleneck_forward_nhwc.1} parent=67 // pred_check
          %p878 = pneg %p877
        $region82: #{bottleneck_forward_nhwc.1} parent=67 // pred_check_branch
          %880 = sbr.rel (%p878) target = $region84
        $region83: #{bottleneck_forward_nhwc.1} parent=67 // pred_region
          %881 = vst.msk [vmem:[#allocation2] sm:$0xff] %vm835, 0.0
          %882 = vst.msk [vmem:[#allocation2 + $0x8] sm:$0xff] %vm835, 0.0
          %vm883 = vcmask 58368
          %884 = vst.msk [vmem:[#allocation2 + $0x10] sm:$0x3] %vm883, 0.0
        $region84: #{bottleneck_forward_nhwc.1} parent=67 // pred_fallthru
          _
        %p885 = scmp.eq.s32.totalorder %s37, 1
        // Predicated region
        $region85: #{bottleneck_forward_nhwc.1} parent=67 // pred_check
          %p886 = pneg %p885
        $region86: #{bottleneck_forward_nhwc.1} parent=67 // pred_check_branch
          %888 = sbr.rel (%p886) target = $region88
        $region87: #{bottleneck_forward_nhwc.1} parent=67 // pred_region
          %s889 = scalar_lea.vmem [#allocation2], 216
          %890 = vst.msk [vmem:[%s889] sm:$0xff] %vm835, 0.0
          %891 = vst.msk [vmem:[%s889 + $0x8] sm:$0xff] %vm835, 0.0
          %vm892 = vcmask 58368
          %893 = vst.msk [vmem:[%s889 + $0x10] sm:$0x3] %vm892, 0.0
        $region88: #{bottleneck_forward_nhwc.1} parent=67 // pred_fallthru
          _
        %v894 = vld [vmem:[#allocation2] sm:$0xff]
        %v895 = vld [vmem:[#allocation2 + $0x8] sm:$0xff]
        %v896 = vld [vmem:[#allocation2 + $0x18] sm:$0xff]
        %v897 = vld [vmem:[#allocation2 + $0x20] sm:$0xff]
        %v898 = vld [vmem:[#allocation2 + $0x30] sm:$0xff]
        %v899 = vld [vmem:[#allocation2 + $0x38] sm:$0xff]
        %v900 = vld [vmem:[#allocation2 + $0x48] sm:$0xff]
        %v901 = vld [vmem:[#allocation2 + $0x50] sm:$0xff]
        %v902 = vld [vmem:[#allocation2 + $0x60] sm:$0xff]
        %v903 = vld [vmem:[#allocation2 + $0x68] sm:$0xff]
        %v904 = vld [vmem:[#allocation2 + $0x78] sm:$0xff]
        %v905 = vld [vmem:[#allocation2 + $0x80] sm:$0xff]
        %v906 = vld [vmem:[#allocation2 + $0x90] sm:$0xff]
        %v907 = vld [vmem:[#allocation2 + $0x98] sm:$0xff]
        %v908 = vld [vmem:[#allocation2 + $0xa8] sm:$0xff]
        %v909 = vld [vmem:[#allocation2 + $0xb0] sm:$0xff]
        %v910 = vld [vmem:[#allocation2 + $0x1] sm:$0xff]
        %v911 = vld [vmem:[#allocation2 + $0x9] sm:$0xff]
        %v912 = vld [vmem:[#allocation2 + $0x19] sm:$0xff]
        %v913 = vld [vmem:[#allocation2 + $0x21] sm:$0xff]
        %v914 = vld [vmem:[#allocation2 + $0x31] sm:$0xff]
        %v915 = vld [vmem:[#allocation2 + $0x39] sm:$0xff]
        %v916 = vld [vmem:[#allocation2 + $0x49] sm:$0xff]
        %v917 = vld [vmem:[#allocation2 + $0x51] sm:$0xff]
        %v918 = vld [vmem:[#allocation2 + $0x61] sm:$0xff]
        %v919 = vld [vmem:[#allocation2 + $0x69] sm:$0xff]
        %v920 = vld [vmem:[#allocation2 + $0x79] sm:$0xff]
        %v921 = vld [vmem:[#allocation2 + $0x81] sm:$0xff]
        %v922 = vld [vmem:[#allocation2 + $0x91] sm:$0xff]
        %v923 = vld [vmem:[#allocation2 + $0x99] sm:$0xff]
        %v924 = vld [vmem:[#allocation2 + $0xa9] sm:$0xff]
        %v925 = vld [vmem:[#allocation2 + $0xb1] sm:$0xff]
        %v926 = vld [vmem:[#allocation2 + $0x2] sm:$0xff]
        %v927 = vld [vmem:[#allocation2 + $0xa] sm:$0xff]
        %v928 = vld [vmem:[#allocation2 + $0x1a] sm:$0xff]
        %v929 = vld [vmem:[#allocation2 + $0x22] sm:$0xff]
        %v930 = vld [vmem:[#allocation2 + $0x32] sm:$0xff]
        %v931 = vld [vmem:[#allocation2 + $0x3a] sm:$0xff]
        %v932 = vld [vmem:[#allocation2 + $0x4a] sm:$0xff]
        %v933 = vld [vmem:[#allocation2 + $0x52] sm:$0xff]
        %v934 = vld [vmem:[#allocation2 + $0x62] sm:$0xff]
        %v935 = vld [vmem:[#allocation2 + $0x6a] sm:$0xff]
        %v936 = vld [vmem:[#allocation2 + $0x7a] sm:$0xff]
        %v937 = vld [vmem:[#allocation2 + $0x82] sm:$0xff]
        %v938 = vld [vmem:[#allocation2 + $0x92] sm:$0xff]
        %v939 = vld [vmem:[#allocation2 + $0x9a] sm:$0xff]
        %v940 = vld [vmem:[#allocation2 + $0xaa] sm:$0xff]
        %v941 = vld [vmem:[#allocation2 + $0xb2] sm:$0xff]
        %s942 = scalar_lea.vmem [#allocation2], 24
        %v943 = vld [vmem:[%s942] sm:$0xff]
        %v944 = vld [vmem:[%s942 + $0x8] sm:$0xff]
        %v945 = vld [vmem:[%s942 + $0x18] sm:$0xff]
        %v946 = vld [vmem:[%s942 + $0x20] sm:$0xff]
        %v947 = vld [vmem:[%s942 + $0x30] sm:$0xff]
        %v948 = vld [vmem:[%s942 + $0x38] sm:$0xff]
        %v949 = vld [vmem:[%s942 + $0x48] sm:$0xff]
        %v950 = vld [vmem:[%s942 + $0x50] sm:$0xff]
        %v951 = vld [vmem:[%s942 + $0x60] sm:$0xff]
        %v952 = vld [vmem:[%s942 + $0x68] sm:$0xff]
        %v953 = vld [vmem:[%s942 + $0x78] sm:$0xff]
        %v954 = vld [vmem:[%s942 + $0x80] sm:$0xff]
        %v955 = vld [vmem:[%s942 + $0x90] sm:$0xff]
        %v956 = vld [vmem:[%s942 + $0x98] sm:$0xff]
        %v957 = vld [vmem:[%s942 + $0xa8] sm:$0xff]
        %v958 = vld [vmem:[%s942 + $0xb0] sm:$0xff]
        %v959 = vld [vmem:[%s942 + $0x1] sm:$0xff]
        %v960 = vld [vmem:[%s942 + $0x9] sm:$0xff]
        %v961 = vld [vmem:[%s942 + $0x19] sm:$0xff]
        %v962 = vld [vmem:[%s942 + $0x21] sm:$0xff]
        %v963 = vld [vmem:[%s942 + $0x31] sm:$0xff]
        %v964 = vld [vmem:[%s942 + $0x39] sm:$0xff]
        %v965 = vld [vmem:[%s942 + $0x49] sm:$0xff]
        %v966 = vld [vmem:[%s942 + $0x51] sm:$0xff]
        %v967 = vld [vmem:[%s942 + $0x61] sm:$0xff]
        %v968 = vld [vmem:[%s942 + $0x69] sm:$0xff]
        %v969 = vld [vmem:[%s942 + $0x79] sm:$0xff]
        %v970 = vld [vmem:[%s942 + $0x81] sm:$0xff]
        %v971 = vld [vmem:[%s942 + $0x91] sm:$0xff]
        %v972 = vld [vmem:[%s942 + $0x99] sm:$0xff]
        %v973 = vld [vmem:[%s942 + $0xa9] sm:$0xff]
        %v974 = vld [vmem:[%s942 + $0xb1] sm:$0xff]
        %v975 = vld [vmem:[%s942 + $0x2] sm:$0xff]
        %v976 = vld [vmem:[%s942 + $0xa] sm:$0xff]
        %v977 = vld [vmem:[%s942 + $0x1a] sm:$0xff]
        %v978 = vld [vmem:[%s942 + $0x22] sm:$0xff]
        %v979 = vld [vmem:[%s942 + $0x32] sm:$0xff]
        %v980 = vld [vmem:[%s942 + $0x3a] sm:$0xff]
        %v981 = vld [vmem:[%s942 + $0x4a] sm:$0xff]
        %v982 = vld [vmem:[%s942 + $0x52] sm:$0xff]
        %v983 = vld [vmem:[%s942 + $0x62] sm:$0xff]
        %v984 = vld [vmem:[%s942 + $0x6a] sm:$0xff]
        %v985 = vld [vmem:[%s942 + $0x7a] sm:$0xff]
        %v986 = vld [vmem:[%s942 + $0x82] sm:$0xff]
        %v987 = vld [vmem:[%s942 + $0x92] sm:$0xff]
        %v988 = vld [vmem:[%s942 + $0x9a] sm:$0xff]
        %v989 = vld [vmem:[%s942 + $0xaa] sm:$0xff]
        %v990 = vld [vmem:[%s942 + $0xb2] sm:$0xff]
        %s991 = scalar_lea.vmem [#allocation2], 48
        %v992 = vld [vmem:[%s991] sm:$0xff]
        %v993 = vld [vmem:[%s991 + $0x8] sm:$0xff]
        %v994 = vld [vmem:[%s991 + $0x18] sm:$0xff]
        %v995 = vld [vmem:[%s991 + $0x20] sm:$0xff]
        %v996 = vld [vmem:[%s991 + $0x30] sm:$0xff]
        %v997 = vld [vmem:[%s991 + $0x38] sm:$0xff]
        %v998 = vld [vmem:[%s991 + $0x48] sm:$0xff]
        %v999 = vld [vmem:[%s991 + $0x50] sm:$0xff]
        %v1000 = vld [vmem:[%s991 + $0x60] sm:$0xff]
        %v1001 = vld [vmem:[%s991 + $0x68] sm:$0xff]
        %v1002 = vld [vmem:[%s991 + $0x78] sm:$0xff]
        %v1003 = vld [vmem:[%s991 + $0x80] sm:$0xff]
        %v1004 = vld [vmem:[%s991 + $0x90] sm:$0xff]
        %v1005 = vld [vmem:[%s991 + $0x98] sm:$0xff]
        %v1006 = vld [vmem:[%s991 + $0xa8] sm:$0xff]
        %v1007 = vld [vmem:[%s991 + $0xb0] sm:$0xff]
        %v1008 = vld [vmem:[%s991 + $0x1] sm:$0xff]
        %v1009 = vld [vmem:[%s991 + $0x9] sm:$0xff]
        %v1010 = vld [vmem:[%s991 + $0x19] sm:$0xff]
        %v1011 = vld [vmem:[%s991 + $0x21] sm:$0xff]
        %v1012 = vld [vmem:[%s991 + $0x31] sm:$0xff]
        %v1013 = vld [vmem:[%s991 + $0x39] sm:$0xff]
        %v1014 = vld [vmem:[%s991 + $0x49] sm:$0xff]
        %v1015 = vld [vmem:[%s991 + $0x51] sm:$0xff]
        %v1016 = vld [vmem:[%s991 + $0x61] sm:$0xff]
        %v1017 = vld [vmem:[%s991 + $0x69] sm:$0xff]
        %v1018 = vld [vmem:[%s991 + $0x79] sm:$0xff]
        %v1019 = vld [vmem:[%s991 + $0x81] sm:$0xff]
        %v1020 = vld [vmem:[%s991 + $0x91] sm:$0xff]
        %v1021 = vld [vmem:[%s991 + $0x99] sm:$0xff]
        %v1022 = vld [vmem:[%s991 + $0xa9] sm:$0xff]
        %v1023 = vld [vmem:[%s991 + $0xb1] sm:$0xff]
        %v1024 = vld [vmem:[%s991 + $0x2] sm:$0xff]
        %v1025 = vld [vmem:[%s991 + $0xa] sm:$0xff]
        %v1026 = vld [vmem:[%s991 + $0x1a] sm:$0xff]
        %v1027 = vld [vmem:[%s991 + $0x22] sm:$0xff]
        %v1028 = vld [vmem:[%s991 + $0x32] sm:$0xff]
        %v1029 = vld [vmem:[%s991 + $0x3a] sm:$0xff]
        %v1030 = vld [vmem:[%s991 + $0x4a] sm:$0xff]
        %v1031 = vld [vmem:[%s991 + $0x52] sm:$0xff]
        %v1032 = vld [vmem:[%s991 + $0x62] sm:$0xff]
        %v1033 = vld [vmem:[%s991 + $0x6a] sm:$0xff]
        %v1034 = vld [vmem:[%s991 + $0x7a] sm:$0xff]
        %v1035 = vld [vmem:[%s991 + $0x82] sm:$0xff]
        %v1036 = vld [vmem:[%s991 + $0x92] sm:$0xff]
        %v1037 = vld [vmem:[%s991 + $0x9a] sm:$0xff]
        %v1038 = vld [vmem:[%s991 + $0xaa] sm:$0xff]
        %v1039 = vld [vmem:[%s991 + $0xb2] sm:$0xff]
        %1056 = vrot.lane.b32.xlu0 %v910, 8
        %v1057 = vpop.permute.xlu0 %1056
        %1058 = vrot.lane.b32.xlu0 %v911, 8
        %v1059 = vpop.permute.xlu0 %1058
        %1060 = vrot.lane.b32.xlu0 %v912, 8
        %v1061 = vpop.permute.xlu0 %1060
        %1062 = vrot.lane.b32.xlu0 %v913, 8
        %v1063 = vpop.permute.xlu0 %1062
        %1064 = vrot.lane.b32.xlu0 %v914, 8
        %v1065 = vpop.permute.xlu0 %1064
        %1066 = vrot.lane.b32.xlu0 %v915, 8
        %v1067 = vpop.permute.xlu0 %1066
        %1068 = vrot.lane.b32.xlu0 %v916, 8
        %v1069 = vpop.permute.xlu0 %1068
        %1070 = vrot.lane.b32.xlu0 %v917, 8
        %v1071 = vpop.permute.xlu0 %1070
        %1072 = vrot.lane.b32.xlu0 %v918, 8
        %v1073 = vpop.permute.xlu0 %1072
        %1074 = vrot.lane.b32.xlu0 %v919, 8
        %v1075 = vpop.permute.xlu0 %1074
        %1076 = vrot.lane.b32.xlu0 %v920, 8
        %v1077 = vpop.permute.xlu0 %1076
        %1078 = vrot.lane.b32.xlu0 %v921, 8
        %v1079 = vpop.permute.xlu0 %1078
        %1080 = vrot.lane.b32.xlu0 %v922, 8
        %v1081 = vpop.permute.xlu0 %1080
        %1082 = vrot.lane.b32.xlu0 %v923, 8
        %v1083 = vpop.permute.xlu0 %1082
        %1084 = vrot.lane.b32.xlu0 %v924, 8
        %v1085 = vpop.permute.xlu0 %1084
        %1086 = vrot.lane.b32.xlu0 %v925, 8
        %v1087 = vpop.permute.xlu0 %1086
        %1120 = vrot.lane.b32.xlu0 %v926, 16
        %v1121 = vpop.permute.xlu0 %1120
        %1122 = vrot.lane.b32.xlu0 %v927, 16
        %v1123 = vpop.permute.xlu0 %1122
        %1124 = vrot.lane.b32.xlu0 %v928, 16
        %v1125 = vpop.permute.xlu0 %1124
        %1126 = vrot.lane.b32.xlu0 %v929, 16
        %v1127 = vpop.permute.xlu0 %1126
        %1128 = vrot.lane.b32.xlu0 %v930, 16
        %v1129 = vpop.permute.xlu0 %1128
        %1130 = vrot.lane.b32.xlu0 %v931, 16
        %v1131 = vpop.permute.xlu0 %1130
        %1132 = vrot.lane.b32.xlu0 %v932, 16
        %v1133 = vpop.permute.xlu0 %1132
        %1134 = vrot.lane.b32.xlu0 %v933, 16
        %v1135 = vpop.permute.xlu0 %1134
        %1136 = vrot.lane.b32.xlu0 %v934, 16
        %v1137 = vpop.permute.xlu0 %1136
        %1138 = vrot.lane.b32.xlu0 %v935, 16
        %v1139 = vpop.permute.xlu0 %1138
        %1140 = vrot.lane.b32.xlu0 %v936, 16
        %v1141 = vpop.permute.xlu0 %1140
        %1142 = vrot.lane.b32.xlu0 %v937, 16
        %v1143 = vpop.permute.xlu0 %1142
        %1144 = vrot.lane.b32.xlu0 %v938, 16
        %v1145 = vpop.permute.xlu0 %1144
        %1146 = vrot.lane.b32.xlu0 %v939, 16
        %v1147 = vpop.permute.xlu0 %1146
        %1148 = vrot.lane.b32.xlu0 %v940, 16
        %v1149 = vpop.permute.xlu0 %1148
        %1150 = vrot.lane.b32.xlu0 %v941, 16
        %v1151 = vpop.permute.xlu0 %1150
        %1184 = vrot.lane.b32.xlu0 %v943, 24
        %v1185 = vpop.permute.xlu0 %1184
        %1186 = vrot.lane.b32.xlu0 %v944, 24
        %v1187 = vpop.permute.xlu0 %1186
        %1188 = vrot.lane.b32.xlu0 %v945, 24
        %v1189 = vpop.permute.xlu0 %1188
        %1190 = vrot.lane.b32.xlu0 %v946, 24
        %v1191 = vpop.permute.xlu0 %1190
        %1192 = vrot.lane.b32.xlu0 %v947, 24
        %v1193 = vpop.permute.xlu0 %1192
        %1194 = vrot.lane.b32.xlu0 %v948, 24
        %v1195 = vpop.permute.xlu0 %1194
        %1196 = vrot.lane.b32.xlu0 %v949, 24
        %v1197 = vpop.permute.xlu0 %1196
        %1198 = vrot.lane.b32.xlu0 %v950, 24
        %v1199 = vpop.permute.xlu0 %1198
        %1200 = vrot.lane.b32.xlu0 %v951, 24
        %v1201 = vpop.permute.xlu0 %1200
        %1202 = vrot.lane.b32.xlu0 %v952, 24
        %v1203 = vpop.permute.xlu0 %1202
        %1204 = vrot.lane.b32.xlu0 %v953, 24
        %v1205 = vpop.permute.xlu0 %1204
        %1206 = vrot.lane.b32.xlu0 %v954, 24
        %v1207 = vpop.permute.xlu0 %1206
        %1208 = vrot.lane.b32.xlu0 %v955, 24
        %v1209 = vpop.permute.xlu0 %1208
        %1210 = vrot.lane.b32.xlu0 %v956, 24
        %v1211 = vpop.permute.xlu0 %1210
        %1212 = vrot.lane.b32.xlu0 %v957, 24
        %v1213 = vpop.permute.xlu0 %1212
        %1214 = vrot.lane.b32.xlu0 %v958, 24
        %v1215 = vpop.permute.xlu0 %1214
        %1248 = vrot.lane.b32.xlu0 %v959, 32
        %v1249 = vpop.permute.xlu0 %1248
        %1250 = vrot.lane.b32.xlu0 %v960, 32
        %v1251 = vpop.permute.xlu0 %1250
        %1252 = vrot.lane.b32.xlu0 %v961, 32
        %v1253 = vpop.permute.xlu0 %1252
        %1254 = vrot.lane.b32.xlu0 %v962, 32
        %v1255 = vpop.permute.xlu0 %1254
        %1256 = vrot.lane.b32.xlu0 %v963, 32
        %v1257 = vpop.permute.xlu0 %1256
        %1258 = vrot.lane.b32.xlu0 %v964, 32
        %v1259 = vpop.permute.xlu0 %1258
        %1260 = vrot.lane.b32.xlu0 %v965, 32
        %v1261 = vpop.permute.xlu0 %1260
        %1262 = vrot.lane.b32.xlu0 %v966, 32
        %v1263 = vpop.permute.xlu0 %1262
        %1264 = vrot.lane.b32.xlu0 %v967, 32
        %v1265 = vpop.permute.xlu0 %1264
        %1266 = vrot.lane.b32.xlu0 %v968, 32
        %v1267 = vpop.permute.xlu0 %1266
        %1268 = vrot.lane.b32.xlu0 %v969, 32
        %v1269 = vpop.permute.xlu0 %1268
        %1270 = vrot.lane.b32.xlu0 %v970, 32
        %v1271 = vpop.permute.xlu0 %1270
        %1272 = vrot.lane.b32.xlu0 %v971, 32
        %v1273 = vpop.permute.xlu0 %1272
        %1274 = vrot.lane.b32.xlu0 %v972, 32
        %v1275 = vpop.permute.xlu0 %1274
        %1276 = vrot.lane.b32.xlu0 %v973, 32
        %v1277 = vpop.permute.xlu0 %1276
        %1278 = vrot.lane.b32.xlu0 %v974, 32
        %v1279 = vpop.permute.xlu0 %1278
        %1312 = vrot.lane.b32.xlu0 %v975, 40
        %v1313 = vpop.permute.xlu0 %1312
        %1314 = vrot.lane.b32.xlu0 %v976, 40
        %v1315 = vpop.permute.xlu0 %1314
        %1316 = vrot.lane.b32.xlu0 %v977, 40
        %v1317 = vpop.permute.xlu0 %1316
        %1318 = vrot.lane.b32.xlu0 %v978, 40
        %v1319 = vpop.permute.xlu0 %1318
        %1320 = vrot.lane.b32.xlu0 %v979, 40
        %v1321 = vpop.permute.xlu0 %1320
        %1322 = vrot.lane.b32.xlu0 %v980, 40
        %v1323 = vpop.permute.xlu0 %1322
        %1324 = vrot.lane.b32.xlu0 %v981, 40
        %v1325 = vpop.permute.xlu0 %1324
        %1326 = vrot.lane.b32.xlu0 %v982, 40
        %v1327 = vpop.permute.xlu0 %1326
        %1328 = vrot.lane.b32.xlu0 %v983, 40
        %v1329 = vpop.permute.xlu0 %1328
        %1330 = vrot.lane.b32.xlu0 %v984, 40
        %v1331 = vpop.permute.xlu0 %1330
        %1332 = vrot.lane.b32.xlu0 %v985, 40
        %v1333 = vpop.permute.xlu0 %1332
        %1334 = vrot.lane.b32.xlu0 %v986, 40
        %v1335 = vpop.permute.xlu0 %1334
        %1336 = vrot.lane.b32.xlu0 %v987, 40
        %v1337 = vpop.permute.xlu0 %1336
        %1338 = vrot.lane.b32.xlu0 %v988, 40
        %v1339 = vpop.permute.xlu0 %1338
        %1340 = vrot.lane.b32.xlu0 %v989, 40
        %v1341 = vpop.permute.xlu0 %1340
        %1342 = vrot.lane.b32.xlu0 %v990, 40
        %v1343 = vpop.permute.xlu0 %1342
        %1376 = vrot.lane.b32.xlu0 %v992, 48
        %v1377 = vpop.permute.xlu0 %1376
        %1378 = vrot.lane.b32.xlu0 %v993, 48
        %v1379 = vpop.permute.xlu0 %1378
        %1380 = vrot.lane.b32.xlu0 %v994, 48
        %v1381 = vpop.permute.xlu0 %1380
        %1382 = vrot.lane.b32.xlu0 %v995, 48
        %v1383 = vpop.permute.xlu0 %1382
        %1384 = vrot.lane.b32.xlu0 %v996, 48
        %v1385 = vpop.permute.xlu0 %1384
        %1386 = vrot.lane.b32.xlu0 %v997, 48
        %v1387 = vpop.permute.xlu0 %1386
        %1388 = vrot.lane.b32.xlu0 %v998, 48
        %v1389 = vpop.permute.xlu0 %1388
        %1390 = vrot.lane.b32.xlu0 %v999, 48
        %v1391 = vpop.permute.xlu0 %1390
        %1392 = vrot.lane.b32.xlu0 %v1000, 48
        %v1393 = vpop.permute.xlu0 %1392
        %1394 = vrot.lane.b32.xlu0 %v1001, 48
        %v1395 = vpop.permute.xlu0 %1394
        %1396 = vrot.lane.b32.xlu0 %v1002, 48
        %v1397 = vpop.permute.xlu0 %1396
        %1398 = vrot.lane.b32.xlu0 %v1003, 48
        %v1399 = vpop.permute.xlu0 %1398
        %1400 = vrot.lane.b32.xlu0 %v1004, 48
        %v1401 = vpop.permute.xlu0 %1400
        %1402 = vrot.lane.b32.xlu0 %v1005, 48
        %v1403 = vpop.permute.xlu0 %1402
        %1404 = vrot.lane.b32.xlu0 %v1006, 48
        %v1405 = vpop.permute.xlu0 %1404
        %1406 = vrot.lane.b32.xlu0 %v1007, 48
        %v1407 = vpop.permute.xlu0 %1406
        %1440 = vrot.lane.b32.xlu0 %v1008, 56
        %v1441 = vpop.permute.xlu0 %1440
        %1442 = vrot.lane.b32.xlu0 %v1009, 56
        %v1443 = vpop.permute.xlu0 %1442
        %1444 = vrot.lane.b32.xlu0 %v1010, 56
        %v1445 = vpop.permute.xlu0 %1444
        %1446 = vrot.lane.b32.xlu0 %v1011, 56
        %v1447 = vpop.permute.xlu0 %1446
        %1448 = vrot.lane.b32.xlu0 %v1012, 56
        %v1449 = vpop.permute.xlu0 %1448
        %1450 = vrot.lane.b32.xlu0 %v1013, 56
        %v1451 = vpop.permute.xlu0 %1450
        %1452 = vrot.lane.b32.xlu0 %v1014, 56
        %v1453 = vpop.permute.xlu0 %1452
        %1454 = vrot.lane.b32.xlu0 %v1015, 56
        %v1455 = vpop.permute.xlu0 %1454
        %1456 = vrot.lane.b32.xlu0 %v1016, 56
        %v1457 = vpop.permute.xlu0 %1456
        %1458 = vrot.lane.b32.xlu0 %v1017, 56
        %v1459 = vpop.permute.xlu0 %1458
        %1460 = vrot.lane.b32.xlu0 %v1018, 56
        %v1461 = vpop.permute.xlu0 %1460
        %1462 = vrot.lane.b32.xlu0 %v1019, 56
        %v1463 = vpop.permute.xlu0 %1462
        %1464 = vrot.lane.b32.xlu0 %v1020, 56
        %v1465 = vpop.permute.xlu0 %1464
        %1466 = vrot.lane.b32.xlu0 %v1021, 56
        %v1467 = vpop.permute.xlu0 %1466
        %1468 = vrot.lane.b32.xlu0 %v1022, 56
        %v1469 = vpop.permute.xlu0 %1468
        %1470 = vrot.lane.b32.xlu0 %v1023, 56
        %v1471 = vpop.permute.xlu0 %1470
        %1504 = vrot.lane.b32.xlu0 %v1024, 64
        %v1505 = vpop.permute.xlu0 %1504
        %1506 = vrot.lane.b32.xlu0 %v1025, 64
        %v1507 = vpop.permute.xlu0 %1506
        %1508 = vrot.lane.b32.xlu0 %v1026, 64
        %v1509 = vpop.permute.xlu0 %1508
        %1510 = vrot.lane.b32.xlu0 %v1027, 64
        %v1511 = vpop.permute.xlu0 %1510
        %1512 = vrot.lane.b32.xlu0 %v1028, 64
        %v1513 = vpop.permute.xlu0 %1512
        %1514 = vrot.lane.b32.xlu0 %v1029, 64
        %v1515 = vpop.permute.xlu0 %1514
        %1516 = vrot.lane.b32.xlu0 %v1030, 64
        %v1517 = vpop.permute.xlu0 %1516
        %1518 = vrot.lane.b32.xlu0 %v1031, 64
        %v1519 = vpop.permute.xlu0 %1518
        %1520 = vrot.lane.b32.xlu0 %v1032, 64
        %v1521 = vpop.permute.xlu0 %1520
        %1522 = vrot.lane.b32.xlu0 %v1033, 64
        %v1523 = vpop.permute.xlu0 %1522
        %1524 = vrot.lane.b32.xlu0 %v1034, 64
        %v1525 = vpop.permute.xlu0 %1524
        %1526 = vrot.lane.b32.xlu0 %v1035, 64
        %v1527 = vpop.permute.xlu0 %1526
        %1528 = vrot.lane.b32.xlu0 %v1036, 64
        %v1529 = vpop.permute.xlu0 %1528
        %1530 = vrot.lane.b32.xlu0 %v1037, 64
        %v1531 = vpop.permute.xlu0 %1530
        %1532 = vrot.lane.b32.xlu0 %v1038, 64
        %v1533 = vpop.permute.xlu0 %1532
        %1534 = vrot.lane.b32.xlu0 %v1039, 64
        %v1535 = vpop.permute.xlu0 %1534
        %v1552 = vsel %vm835, %v894, %v1057
        %v1553 = vsel %vm835, %v895, %v1059
        %v1554 = vsel %vm835, %v896, %v1061
        %v1555 = vsel %vm835, %v897, %v1063
        %v1556 = vsel %vm835, %v898, %v1065
        %v1557 = vsel %vm835, %v899, %v1067
        %v1558 = vsel %vm835, %v900, %v1069
        %v1559 = vsel %vm835, %v901, %v1071
        %v1560 = vsel %vm835, %v902, %v1073
        %v1561 = vsel %vm835, %v903, %v1075
        %v1562 = vsel %vm835, %v904, %v1077
        %v1563 = vsel %vm835, %v905, %v1079
        %v1564 = vsel %vm835, %v906, %v1081
        %v1565 = vsel %vm835, %v907, %v1083
        %v1566 = vsel %vm835, %v908, %v1085
        %v1567 = vsel %vm835, %v909, %v1087
        %vm1568 = vcmask 130048
        %v1569 = vsel %vm1568, %v1552, %v1121
        %v1570 = vsel %vm1568, %v1553, %v1123
        %v1571 = vsel %vm1568, %v1554, %v1125
        %v1572 = vsel %vm1568, %v1555, %v1127
        %v1573 = vsel %vm1568, %v1556, %v1129
        %v1574 = vsel %vm1568, %v1557, %v1131
        %v1575 = vsel %vm1568, %v1558, %v1133
        %v1576 = vsel %vm1568, %v1559, %v1135
        %v1577 = vsel %vm1568, %v1560, %v1137
        %v1578 = vsel %vm1568, %v1561, %v1139
        %v1579 = vsel %vm1568, %v1562, %v1141
        %v1580 = vsel %vm1568, %v1563, %v1143
        %v1581 = vsel %vm1568, %v1564, %v1145
        %v1582 = vsel %vm1568, %v1565, %v1147
        %v1583 = vsel %vm1568, %v1566, %v1149
        %v1584 = vsel %vm1568, %v1567, %v1151
        %vm1585 = vcmask 195584
        %v1586 = vsel %vm1585, %v1569, %v1185
        %v1587 = vsel %vm1585, %v1570, %v1187
        %v1588 = vsel %vm1585, %v1571, %v1189
        %v1589 = vsel %vm1585, %v1572, %v1191
        %v1590 = vsel %vm1585, %v1573, %v1193
        %v1591 = vsel %vm1585, %v1574, %v1195
        %v1592 = vsel %vm1585, %v1575, %v1197
        %v1593 = vsel %vm1585, %v1576, %v1199
        %v1594 = vsel %vm1585, %v1577, %v1201
        %v1595 = vsel %vm1585, %v1578, %v1203
        %v1596 = vsel %vm1585, %v1579, %v1205
        %v1597 = vsel %vm1585, %v1580, %v1207
        %v1598 = vsel %vm1585, %v1581, %v1209
        %v1599 = vsel %vm1585, %v1582, %v1211
        %v1600 = vsel %vm1585, %v1583, %v1213
        %v1601 = vsel %vm1585, %v1584, %v1215
        %v1602 = vsel %vm617, %v1586, %v1249
        %v1603 = vsel %vm617, %v1587, %v1251
        %v1604 = vsel %vm617, %v1588, %v1253
        %v1605 = vsel %vm617, %v1589, %v1255
        %v1606 = vsel %vm617, %v1590, %v1257
        %v1607 = vsel %vm617, %v1591, %v1259
        %v1608 = vsel %vm617, %v1592, %v1261
        %v1609 = vsel %vm617, %v1593, %v1263
        %v1610 = vsel %vm617, %v1594, %v1265
        %v1611 = vsel %vm617, %v1595, %v1267
        %v1612 = vsel %vm617, %v1596, %v1269
        %v1613 = vsel %vm617, %v1597, %v1271
        %v1614 = vsel %vm617, %v1598, %v1273
        %v1615 = vsel %vm617, %v1599, %v1275
        %v1616 = vsel %vm617, %v1600, %v1277
        %v1617 = vsel %vm617, %v1601, %v1279
        %vm1618 = vcmask 326656
        %v1619 = vsel %vm1618, %v1602, %v1313
        %v1620 = vsel %vm1618, %v1603, %v1315
        %v1621 = vsel %vm1618, %v1604, %v1317
        %v1622 = vsel %vm1618, %v1605, %v1319
        %v1623 = vsel %vm1618, %v1606, %v1321
        %v1624 = vsel %vm1618, %v1607, %v1323
        %v1625 = vsel %vm1618, %v1608, %v1325
        %v1626 = vsel %vm1618, %v1609, %v1327
        %v1627 = vsel %vm1618, %v1610, %v1329
        %v1628 = vsel %vm1618, %v1611, %v1331
        %v1629 = vsel %vm1618, %v1612, %v1333
        %v1630 = vsel %vm1618, %v1613, %v1335
        %v1631 = vsel %vm1618, %v1614, %v1337
        %v1632 = vsel %vm1618, %v1615, %v1339
        %v1633 = vsel %vm1618, %v1616, %v1341
        %v1634 = vsel %vm1618, %v1617, %v1343
        %vm1635 = vcmask 392192
        %v1636 = vsel %vm1635, %v1619, %v1377
        %v1637 = vsel %vm1635, %v1620, %v1379
        %v1638 = vsel %vm1635, %v1621, %v1381
        %v1639 = vsel %vm1635, %v1622, %v1383
        %v1640 = vsel %vm1635, %v1623, %v1385
        %v1641 = vsel %vm1635, %v1624, %v1387
        %v1642 = vsel %vm1635, %v1625, %v1389
        %v1643 = vsel %vm1635, %v1626, %v1391
        %v1644 = vsel %vm1635, %v1627, %v1393
        %v1645 = vsel %vm1635, %v1628, %v1395
        %v1646 = vsel %vm1635, %v1629, %v1397
        %v1647 = vsel %vm1635, %v1630, %v1399
        %v1648 = vsel %vm1635, %v1631, %v1401
        %v1649 = vsel %vm1635, %v1632, %v1403
        %v1650 = vsel %vm1635, %v1633, %v1405
        %v1651 = vsel %vm1635, %v1634, %v1407
        %vm1652 = vcmask 457728
        %v1653 = vsel %vm1652, %v1636, %v1441
        %v1654 = vsel %vm1652, %v1637, %v1443
        %v1655 = vsel %vm1652, %v1638, %v1445
        %v1656 = vsel %vm1652, %v1639, %v1447
        %v1657 = vsel %vm1652, %v1640, %v1449
        %v1658 = vsel %vm1652, %v1641, %v1451
        %v1659 = vsel %vm1652, %v1642, %v1453
        %v1660 = vsel %vm1652, %v1643, %v1455
        %v1661 = vsel %vm1652, %v1644, %v1457
        %v1662 = vsel %vm1652, %v1645, %v1459
        %v1663 = vsel %vm1652, %v1646, %v1461
        %v1664 = vsel %vm1652, %v1647, %v1463
        %v1665 = vsel %vm1652, %v1648, %v1465
        %v1666 = vsel %vm1652, %v1649, %v1467
        %v1667 = vsel %vm1652, %v1650, %v1469
        %v1668 = vsel %vm1652, %v1651, %v1471
        %vm1669 = vcmask 523264
        %v1670 = vsel %vm1669, %v1653, %v1505
        %v1671 = vsel %vm1669, %v1654, %v1507
        %v1672 = vsel %vm1669, %v1655, %v1509
        %v1673 = vsel %vm1669, %v1656, %v1511
        %v1674 = vsel %vm1669, %v1657, %v1513
        %v1675 = vsel %vm1669, %v1658, %v1515
        %v1676 = vsel %vm1669, %v1659, %v1517
        %v1677 = vsel %vm1669, %v1660, %v1519
        %v1678 = vsel %vm1669, %v1661, %v1521
        %v1679 = vsel %vm1669, %v1662, %v1523
        %v1680 = vsel %vm1669, %v1663, %v1525
        %v1681 = vsel %vm1669, %v1664, %v1527
        %v1682 = vsel %vm1669, %v1665, %v1529
        %v1683 = vsel %vm1669, %v1666, %v1531
        %v1684 = vsel %vm1669, %v1667, %v1533
        %v1685 = vsel %vm1669, %v1668, %v1535
        %v1686 = vpack.c.bf16 %v1671, %v1670
        %v1687 = vpack.c.bf16 %v1673, %v1672
        %v1688 = vpack.c.bf16 %v1675, %v1674
        %v1689 = vpack.c.bf16 %v1677, %v1676
        %v1690 = vpack.c.bf16 %v1679, %v1678
        %v1691 = vpack.c.bf16 %v1681, %v1680
        %v1692 = vpack.c.bf16 %v1683, %v1682
        %v1693 = vpack.c.bf16 %v1685, %v1684
        %v1694 = vld [vmem:[%s6] sm:$0xf]
        %v1695 = vld [vmem:[%s6 + $0x4] sm:$0xf]
        %v1696 = vld [vmem:[%s6 + $0x8] sm:$0xf]
        %v1697 = vld [vmem:[%s6 + $0xc] sm:$0xf]
        %v1698 = vld [vmem:[%s6 + $0x10] sm:$0xf]
        %v1699 = vld [vmem:[%s6 + $0x14] sm:$0xf]
        %v1700 = vld [vmem:[%s6 + $0x18] sm:$0xf]
        %v1701 = vld [vmem:[%s6 + $0x1c] sm:$0xf]
        %v1702 = vld [vmem:[%s6 + $0x20] sm:$0xf]
        %v1712 = vunpack.c.l.b16 %v1694
        %v1713 = vunpack.c.l.b16 %v1695
        %v1714 = vunpack.c.l.b16 %v1696
        %v1715 = vunpack.c.l.b16 %v1697
        %v1716 = vunpack.c.l.b16 %v1698
        %v1717 = vunpack.c.l.b16 %v1699
        %v1718 = vunpack.c.l.b16 %v1700
        %v1719 = vunpack.c.l.b16 %v1701
        %v1720 = vunpack.c.l.b16 %v1702
        %v1721 = vpack.c.b16 %v1713, %v1712
        %v1722 = vpack.c.b16 %v1715, %v1714
        %v1723 = vpack.c.b16 %v1717, %v1716
        %v1724 = vpack.c.b16 %v1719, %v1718
        %v1725 = vpack.c.b16 %v1720, %v1720
        %vm1730 = vcmask 588800
        %v1732 = vsel %vm1730, %v1686, 0
        %v1735 = vsel %vm1730, %v1687, 0
        %v1738 = vsel %vm1730, %v1688, 0
        %v1741 = vsel %vm1730, %v1689, 0
        %v1744 = vsel %vm1730, %v1690, 0
        %v1747 = vsel %vm1730, %v1691, 0
        %v1750 = vsel %vm1730, %v1692, 0
        %v1753 = vsel %vm1730, %v1693, 0
        %vm1755 = vcmask 1043456
        %v1757 = vsel %vm1755, %v1725, 0
        %1759 = vmatprep.subr.bf16.mxu0 0
        %1760 = vmatpush1.bf16.msra.mxu0 %v1721
        %1761 = vmatprep.subr.bf16.mxu0 0
        %1762 = vmatpush1.bf16.msra.mxu0 %v1722
        %1763 = vmatprep.subr.bf16.mxu0 0
        %1764 = vmatpush1.bf16.msra.mxu0 %v1723
        %1765 = vmatprep.subr.bf16.mxu0 0
        %1766 = vmatpush1.bf16.msra.mxu0 %v1724
        %1767 = vmatprep.subr.bf16.mxu0 0
        %1768 = vmatpush1.bf16.msra.mxu0 %v1757
        %1769 = vmatprep.subr.bf16.mxu0 0
        %1770 = vmatpush1.bf16.msra.mxu0 0
        %1771 = vmatprep.subr.bf16.mxu0 0
        %1772 = vmatpush1.bf16.msra.mxu0 0
        %1773 = vmatprep.subr.bf16.mxu0 0
        %1774 = vmatpush1.bf16.msra.mxu0 0
        %1775 = vmatprep.subr.bf16.mxu0 0
        %1776 = vmatpush1.bf16.msra.mxu0 0
        %1777 = vmatprep.subr.bf16.mxu0 0
        %1778 = vmatpush1.bf16.msra.mxu0 0
        %1779 = vmatprep.subr.bf16.mxu0 0
        %1780 = vmatpush1.bf16.msra.mxu0 0
        %1781 = vmatprep.subr.bf16.mxu0 0
        %1782 = vmatpush1.bf16.msra.mxu0 0
        %1783 = vmatprep.subr.bf16.mxu0 0
        %1784 = vmatpush1.bf16.msra.mxu0 0
        %1785 = vmatprep.subr.bf16.mxu0 0
        %1786 = vmatpush1.bf16.msra.mxu0 0
        %1787 = vmatprep.subr.bf16.mxu0 0
        %1788 = vmatpush1.bf16.msra.mxu0 0
        %1789 = vmatprep.subr.bf16.mxu0 0
        %1790 = vmatpush1.bf16.msra.mxu0 0
        %1791 = vmatprep.mubr.bf16.mxu0 0
        %1792 = vmatmul.mubr.bf16.gmra.mrb[0].mxu0 %v1732
        %v1793 = vpop.f32.mrb[0].mxu0
        %v1794 = vadd.f32 0.0, %v1793
        %v1795 = vpop.f32.mrb[0].mxu0
        %v1796 = vpop.f32.mrb[0].mxu0
        %v1797 = vadd.f32 0.0, %v1796
        %v1798 = vpop.f32.mrb[0].mxu0
        %1799 = vmatprep.mubr.bf16.mxu0 0
        %1800 = vmatmul.mubr.bf16.gmra.mrb[0].mxu0 %v1735
        %v1801 = vpop.f32.mrb[0].mxu0
        %v1802 = vadd.f32 0.0, %v1801
        %v1803 = vpop.f32.mrb[0].mxu0
        %v1804 = vpop.f32.mrb[0].mxu0
        %v1805 = vadd.f32 0.0, %v1804
        %v1806 = vpop.f32.mrb[0].mxu0
        %1807 = vmatprep.mubr.bf16.mxu0 0
        %1808 = vmatmul.mubr.bf16.gmra.mrb[0].mxu0 %v1738
        %v1809 = vpop.f32.mrb[0].mxu0
        %v1810 = vadd.f32 0.0, %v1809
        %v1811 = vpop.f32.mrb[0].mxu0
        %v1812 = vpop.f32.mrb[0].mxu0
        %v1813 = vadd.f32 0.0, %v1812
        %v1814 = vpop.f32.mrb[0].mxu0
        %1815 = vmatprep.mubr.bf16.mxu0 0
        %1816 = vmatmul.mubr.bf16.gmra.mrb[0].mxu0 %v1741
        %v1817 = vpop.f32.mrb[0].mxu0
        %v1818 = vadd.f32 0.0, %v1817
        %v1819 = vpop.f32.mrb[0].mxu0
        %v1820 = vpop.f32.mrb[0].mxu0
        %v1821 = vadd.f32 0.0, %v1820
        %v1822 = vpop.f32.mrb[0].mxu0
        %1823 = vmatprep.mubr.bf16.mxu0 0
        %1824 = vmatmul.mubr.bf16.gmra.mrb[0].mxu0 %v1744
        %v1825 = vpop.f32.mrb[0].mxu0
        %v1826 = vadd.f32 0.0, %v1825
        %v1827 = vpop.f32.mrb[0].mxu0
        %v1828 = vpop.f32.mrb[0].mxu0
        %v1829 = vadd.f32 0.0, %v1828
        %v1830 = vpop.f32.mrb[0].mxu0
        %1831 = vmatprep.mubr.bf16.mxu0 0
        %1832 = vmatmul.mubr.bf16.gmra.mrb[0].mxu0 %v1747
        %v1833 = vpop.f32.mrb[0].mxu0
        %v1834 = vadd.f32 0.0, %v1833
        %v1835 = vpop.f32.mrb[0].mxu0
        %v1836 = vpop.f32.mrb[0].mxu0
        %v1837 = vadd.f32 0.0, %v1836
        %v1838 = vpop.f32.mrb[0].mxu0
        %1839 = vmatprep.mubr.bf16.mxu0 0
        %1840 = vmatmul.mubr.bf16.gmra.mrb[0].mxu0 %v1750
        %v1841 = vpop.f32.mrb[0].mxu0
        %v1842 = vadd.f32 0.0, %v1841
        %v1843 = vpop.f32.mrb[0].mxu0
        %v1844 = vpop.f32.mrb[0].mxu0
        %v1845 = vadd.f32 0.0, %v1844
        %v1846 = vpop.f32.mrb[0].mxu0
        %1847 = vmatprep.mubr.bf16.mxu0 0
        %1848 = vmatmul.mubr.bf16.gmra.mrb[0].mxu0 %v1753
        %v1849 = vpop.f32.mrb[0].mxu0
        %v1850 = vadd.f32 0.0, %v1849
        %v1851 = vpop.f32.mrb[0].mxu0
        %v1852 = vpop.f32.mrb[0].mxu0
        %v1853 = vadd.f32 0.0, %v1852
        %v1854 = vpop.f32.mrb[0].mxu0
        %1855 = vdwg.mxu0
        %v1856 = vld [vmem:[%s7] sm:$0x1]
        %v1858 = vlaneseq
        %v1859 = vshrl.u32 %v1858, 7
        %v1860 = vsub.s32 0, %v1859
        %v1861 = vrot.slane %v1856, %v1860
        %v1863 = vmul.f32 %v1794, %v1861
        %v1864 = vmul.f32 %v1797, %v1861
        %v1865 = vmul.f32 %v1802, %v1861
        %v1866 = vmul.f32 %v1805, %v1861
        %v1867 = vmul.f32 %v1810, %v1861
        %v1868 = vmul.f32 %v1813, %v1861
        %v1869 = vmul.f32 %v1818, %v1861
        %v1870 = vmul.f32 %v1821, %v1861
        %v1871 = vmul.f32 %v1826, %v1861
        %v1872 = vmul.f32 %v1829, %v1861
        %v1873 = vmul.f32 %v1834, %v1861
        %v1874 = vmul.f32 %v1837, %v1861
        %v1875 = vmul.f32 %v1842, %v1861
        %v1876 = vmul.f32 %v1845, %v1861
        %v1877 = vmul.f32 %v1850, %v1861
        %v1878 = vmul.f32 %v1853, %v1861
        %v1879 = vld [vmem:[%s8] sm:$0x1]
        %v1881 = vlaneseq
        %v1882 = vshrl.u32 %v1881, 7
        %v1883 = vsub.s32 0, %v1882
        %v1884 = vrot.slane %v1879, %v1883
        %v1886 = vadd.f32 %v1863, %v1884
        %v1887 = vadd.f32 %v1864, %v1884
        %v1888 = vadd.f32 %v1865, %v1884
        %v1889 = vadd.f32 %v1866, %v1884
        %v1890 = vadd.f32 %v1867, %v1884
        %v1891 = vadd.f32 %v1868, %v1884
        %v1892 = vadd.f32 %v1869, %v1884
        %v1893 = vadd.f32 %v1870, %v1884
        %v1894 = vadd.f32 %v1871, %v1884
        %v1895 = vadd.f32 %v1872, %v1884
        %v1896 = vadd.f32 %v1873, %v1884
        %v1897 = vadd.f32 %v1874, %v1884
        %v1898 = vadd.f32 %v1875, %v1884
        %v1899 = vadd.f32 %v1876, %v1884
        %v1900 = vadd.f32 %v1877, %v1884
        %v1901 = vadd.f32 %v1878, %v1884
        %v1902 = vmax.f32 %v1886, 0.0
        %v1903 = vmax.f32 %v1887, 0.0
        %v1904 = vmax.f32 %v1888, 0.0
        %v1905 = vmax.f32 %v1889, 0.0
        %v1906 = vmax.f32 %v1890, 0.0
        %v1907 = vmax.f32 %v1891, 0.0
        %v1908 = vmax.f32 %v1892, 0.0
        %v1909 = vmax.f32 %v1893, 0.0
        %v1910 = vmax.f32 %v1894, 0.0
        %v1911 = vmax.f32 %v1895, 0.0
        %v1912 = vmax.f32 %v1896, 0.0
        %v1913 = vmax.f32 %v1897, 0.0
        %v1914 = vmax.f32 %v1898, 0.0
        %v1915 = vmax.f32 %v1899, 0.0
        %v1916 = vmax.f32 %v1900, 0.0
        %v1917 = vmax.f32 %v1901, 0.0
        %v1918 = vpack.c.bf16 %v1903, %v1902
        %v1919 = vpack.c.bf16 %v1905, %v1904
        %v1920 = vpack.c.bf16 %v1907, %v1906
        %v1921 = vpack.c.bf16 %v1909, %v1908
        %v1922 = vpack.c.bf16 %v1911, %v1910
        %v1923 = vpack.c.bf16 %v1913, %v1912
        %v1924 = vpack.c.bf16 %v1915, %v1914
        %v1925 = vpack.c.bf16 %v1917, %v1916
        %v1926 = vld [vmem:[%s9] sm:$0xf]
        %v1928 = vsel %vm835, %v1918, 0
        %v1931 = vsel %vm835, %v1919, 0
        %v1934 = vsel %vm835, %v1920, 0
        %v1937 = vsel %vm835, %v1921, 0
        %v1940 = vsel %vm835, %v1922, 0
        %v1943 = vsel %vm835, %v1923, 0
        %v1946 = vsel %vm835, %v1924, 0
        %v1949 = vsel %vm835, %v1925, 0
        %v1952 = vsel %vm1755, %v1926, 0
        %1954 = vmatprep.subr.bf16.mxu0 0
        %1955 = vmatpush1.bf16.msra.mxu0 %v1952
        %1956 = vmatprep.subr.bf16.mxu0 0
        %1957 = vmatpush1.bf16.msra.mxu0 0
        %1958 = vmatprep.subr.bf16.mxu0 0
        %1959 = vmatpush1.bf16.msra.mxu0 0
        %1960 = vmatprep.subr.bf16.mxu0 0
        %1961 = vmatpush1.bf16.msra.mxu0 0
        %1962 = vmatprep.subr.bf16.mxu0 0
        %1963 = vmatpush1.bf16.msra.mxu0 0
        %1964 = vmatprep.subr.bf16.mxu0 0
        %1965 = vmatpush1.bf16.msra.mxu0 0
        %1966 = vmatprep.subr.bf16.mxu0 0
        %1967 = vmatpush1.bf16.msra.mxu0 0
        %1968 = vmatprep.subr.bf16.mxu0 0
        %1969 = vmatpush1.bf16.msra.mxu0 0
        %1970 = vmatprep.subr.bf16.mxu0 0
        %1971 = vmatpush1.bf16.msra.mxu0 0
        %1972 = vmatprep.subr.bf16.mxu0 0
        %1973 = vmatpush1.bf16.msra.mxu0 0
        %1974 = vmatprep.subr.bf16.mxu0 0
        %1975 = vmatpush1.bf16.msra.mxu0 0
        %1976 = vmatprep.subr.bf16.mxu0 0
        %1977 = vmatpush1.bf16.msra.mxu0 0
        %1978 = vmatprep.subr.bf16.mxu0 0
        %1979 = vmatpush1.bf16.msra.mxu0 0
        %1980 = vmatprep.subr.bf16.mxu0 0
        %1981 = vmatpush1.bf16.msra.mxu0 0
        %1982 = vmatprep.subr.bf16.mxu0 0
        %1983 = vmatpush1.bf16.msra.mxu0 0
        %1984 = vmatprep.subr.bf16.mxu0 0
        %1985 = vmatpush1.bf16.msra.mxu0 0
        %1986 = vmatprep.mubr.bf16.mxu0 0
        %1987 = vmatmul.mubr.bf16.gmra.mrb[0].mxu0 %v1928
        %v1988 = vpop.f32.mrb[0].mxu0
        %v1989 = vadd.f32 0.0, %v1988
        %v1990 = vpop.f32.mrb[0].mxu0
        %v1991 = vpop.f32.mrb[0].mxu0
        %v1992 = vadd.f32 0.0, %v1991
        %v1993 = vpop.f32.mrb[0].mxu0
        %1994 = vmatprep.mubr.bf16.mxu0 0
        %1995 = vmatmul.mubr.bf16.gmra.mrb[0].mxu0 %v1931
        %v1996 = vpop.f32.mrb[0].mxu0
        %v1997 = vadd.f32 0.0, %v1996
        %v1998 = vpop.f32.mrb[0].mxu0
        %v1999 = vpop.f32.mrb[0].mxu0
        %v2000 = vadd.f32 0.0, %v1999
        %v2001 = vpop.f32.mrb[0].mxu0
        %2002 = vmatprep.mubr.bf16.mxu0 0
        %2003 = vmatmul.mubr.bf16.gmra.mrb[0].mxu0 %v1934
        %v2004 = vpop.f32.mrb[0].mxu0
        %v2005 = vadd.f32 0.0, %v2004
        %v2006 = vpop.f32.mrb[0].mxu0
        %v2007 = vpop.f32.mrb[0].mxu0
        %v2008 = vadd.f32 0.0, %v2007
        %v2009 = vpop.f32.mrb[0].mxu0
        %2010 = vmatprep.mubr.bf16.mxu0 0
        %2011 = vmatmul.mubr.bf16.gmra.mrb[0].mxu0 %v1937
        %v2012 = vpop.f32.mrb[0].mxu0
        %v2013 = vadd.f32 0.0, %v2012
        %v2014 = vpop.f32.mrb[0].mxu0
        %v2015 = vpop.f32.mrb[0].mxu0
        %v2016 = vadd.f32 0.0, %v2015
        %v2017 = vpop.f32.mrb[0].mxu0
        %2018 = vmatprep.mubr.bf16.mxu0 0
        %2019 = vmatmul.mubr.bf16.gmra.mrb[0].mxu0 %v1940
        %v2020 = vpop.f32.mrb[0].mxu0
        %v2021 = vadd.f32 0.0, %v2020
        %v2022 = vpop.f32.mrb[0].mxu0
        %v2023 = vpop.f32.mrb[0].mxu0
        %v2024 = vadd.f32 0.0, %v2023
        %v2025 = vpop.f32.mrb[0].mxu0
        %2026 = vmatprep.mubr.bf16.mxu0 0
        %2027 = vmatmul.mubr.bf16.gmra.mrb[0].mxu0 %v1943
        %v2028 = vpop.f32.mrb[0].mxu0
        %v2029 = vadd.f32 0.0, %v2028
        %v2030 = vpop.f32.mrb[0].mxu0
        %v2031 = vpop.f32.mrb[0].mxu0
        %v2032 = vadd.f32 0.0, %v2031
        %v2033 = vpop.f32.mrb[0].mxu0
        %2034 = vmatprep.mubr.bf16.mxu0 0
        %2035 = vmatmul.mubr.bf16.gmra.mrb[0].mxu0 %v1946
        %v2036 = vpop.f32.mrb[0].mxu0
        %v2037 = vadd.f32 0.0, %v2036
        %v2038 = vpop.f32.mrb[0].mxu0
        %v2039 = vpop.f32.mrb[0].mxu0
        %v2040 = vadd.f32 0.0, %v2039
        %v2041 = vpop.f32.mrb[0].mxu0
        %2042 = vmatprep.mubr.bf16.mxu0 0
        %2043 = vmatmul.mubr.bf16.gmra.mrb[0].mxu0 %v1949
        %v2044 = vpop.f32.mrb[0].mxu0
        %v2045 = vadd.f32 0.0, %v2044
        %v2046 = vpop.f32.mrb[0].mxu0
        %v2047 = vpop.f32.mrb[0].mxu0
        %v2048 = vadd.f32 0.0, %v2047
        %v2049 = vpop.f32.mrb[0].mxu0
        %2050 = vdwg.mxu0
        %v2051 = vld [vmem:[%s10] sm:$0x1]
        %v2053 = vlaneseq
        %v2054 = vshrl.u32 %v2053, 7
        %v2055 = vsub.s32 0, %v2054
        %v2056 = vrot.slane %v2051, %v2055
        %v2058 = vmul.f32 %v1989, %v2056
        %v2059 = vmul.f32 %v1992, %v2056
        %v2060 = vmul.f32 %v1997, %v2056
        %v2061 = vmul.f32 %v2000, %v2056
        %v2062 = vmul.f32 %v2005, %v2056
        %v2063 = vmul.f32 %v2008, %v2056
        %v2064 = vmul.f32 %v2013, %v2056
        %v2065 = vmul.f32 %v2016, %v2056
        %v2066 = vmul.f32 %v2021, %v2056
        %v2067 = vmul.f32 %v2024, %v2056
        %v2068 = vmul.f32 %v2029, %v2056
        %v2069 = vmul.f32 %v2032, %v2056
        %v2070 = vmul.f32 %v2037, %v2056
        %v2071 = vmul.f32 %v2040, %v2056
        %v2072 = vmul.f32 %v2045, %v2056
        %v2073 = vmul.f32 %v2048, %v2056
        %v2074 = vld [vmem:[%s11] sm:$0x1]
        %v2076 = vlaneseq
        %v2077 = vshrl.u32 %v2076, 7
        %v2078 = vsub.s32 0, %v2077
        %v2079 = vrot.slane %v2074, %v2078
        %v2081 = vadd.f32 %v2058, %v2079
        %v2082 = vadd.f32 %v2059, %v2079
        %v2083 = vadd.f32 %v2060, %v2079
        %v2084 = vadd.f32 %v2061, %v2079
        %v2085 = vadd.f32 %v2062, %v2079
        %v2086 = vadd.f32 %v2063, %v2079
        %v2087 = vadd.f32 %v2064, %v2079
        %v2088 = vadd.f32 %v2065, %v2079
        %v2089 = vadd.f32 %v2066, %v2079
        %v2090 = vadd.f32 %v2067, %v2079
        %v2091 = vadd.f32 %v2068, %v2079
        %v2092 = vadd.f32 %v2069, %v2079
        %v2093 = vadd.f32 %v2070, %v2079
        %v2094 = vadd.f32 %v2071, %v2079
        %v2095 = vadd.f32 %v2072, %v2079
        %v2096 = vadd.f32 %v2073, %v2079
        %v2097 = vld [vmem:[%s491] sm:$0xff]
        %v2098 = vld [vmem:[%s491 + $0x8] sm:$0xff]
        %v2099 = vld [vmem:[%s491 + $0x10] sm:$0xff]
        %v2100 = vld [vmem:[%s491 + $0x18] sm:$0xff]
        %v2101 = vld [vmem:[%s491 + $0x20] sm:$0xff]
        %v2102 = vld [vmem:[%s491 + $0x28] sm:$0xff]
        %v2103 = vld [vmem:[%s491 + $0x30] sm:$0xff]
        %v2104 = vld [vmem:[%s491 + $0x38] sm:$0xff]
        %v2105 = vld [vmem:[%s491 + $0x40] sm:$0xff]
        %v2106 = vld [vmem:[%s491 + $0x48] sm:$0xff]
        %v2107 = vld [vmem:[%s491 + $0x50] sm:$0xff]
        %v2108 = vld [vmem:[%s491 + $0x58] sm:$0xff]
        %v2109 = vld [vmem:[%s491 + $0x60] sm:$0xff]
        %v2110 = vld [vmem:[%s491 + $0x68] sm:$0xff]
        %v2111 = vld [vmem:[%s491 + $0x70] sm:$0xff]
        %v2112 = vld [vmem:[%s491 + $0x78] sm:$0xff]
        %v2113 = vadd.f32 %v2081, %v2097
        %v2114 = vadd.f32 %v2082, %v2098
        %v2115 = vadd.f32 %v2083, %v2099
        %v2116 = vadd.f32 %v2084, %v2100
        %v2117 = vadd.f32 %v2085, %v2101
        %v2118 = vadd.f32 %v2086, %v2102
        %v2119 = vadd.f32 %v2087, %v2103
        %v2120 = vadd.f32 %v2088, %v2104
        %v2121 = vadd.f32 %v2089, %v2105
        %v2122 = vadd.f32 %v2090, %v2106
        %v2123 = vadd.f32 %v2091, %v2107
        %v2124 = vadd.f32 %v2092, %v2108
        %v2125 = vadd.f32 %v2093, %v2109
        %v2126 = vadd.f32 %v2094, %v2110
        %v2127 = vadd.f32 %v2095, %v2111
        %v2128 = vadd.f32 %v2096, %v2112
        %v2129 = vmax.f32 %v2113, 0.0
        %v2130 = vmax.f32 %v2114, 0.0
        %v2131 = vmax.f32 %v2115, 0.0
        %v2132 = vmax.f32 %v2116, 0.0
        %v2133 = vmax.f32 %v2117, 0.0
        %v2134 = vmax.f32 %v2118, 0.0
        %v2135 = vmax.f32 %v2119, 0.0
        %v2136 = vmax.f32 %v2120, 0.0
        %v2137 = vmax.f32 %v2121, 0.0
        %v2138 = vmax.f32 %v2122, 0.0
        %v2139 = vmax.f32 %v2123, 0.0
        %v2140 = vmax.f32 %v2124, 0.0
        %v2141 = vmax.f32 %v2125, 0.0
        %v2142 = vmax.f32 %v2126, 0.0
        %v2143 = vmax.f32 %v2127, 0.0
        %v2144 = vmax.f32 %v2128, 0.0
        %2145 = vst.msk [vmem:[%s559] sm:$0xff] %vm617, %v2129
        %2146 = vst.msk [vmem:[%s559 + $0x8] sm:$0xff] %vm617, %v2130
        %2147 = vst.msk [vmem:[%s559 + $0x10] sm:$0xff] %vm617, %v2131
        %2148 = vst.msk [vmem:[%s559 + $0x18] sm:$0xff] %vm617, %v2132
        %2149 = vst.msk [vmem:[%s559 + $0x20] sm:$0xff] %vm617, %v2133
        %2150 = vst.msk [vmem:[%s559 + $0x28] sm:$0xff] %vm617, %v2134
        %2151 = vst.msk [vmem:[%s559 + $0x30] sm:$0xff] %vm617, %v2135
        %2152 = vst.msk [vmem:[%s559 + $0x38] sm:$0xff] %vm617, %v2136
        %2153 = vst.msk [vmem:[%s559 + $0x40] sm:$0xff] %vm617, %v2137
        %2154 = vst.msk [vmem:[%s559 + $0x48] sm:$0xff] %vm617, %v2138
        %2155 = vst.msk [vmem:[%s559 + $0x50] sm:$0xff] %vm617, %v2139
        %2156 = vst.msk [vmem:[%s559 + $0x58] sm:$0xff] %vm617, %v2140
        %2157 = vst.msk [vmem:[%s559 + $0x60] sm:$0xff] %vm617, %v2141
        %2158 = vst.msk [vmem:[%s559 + $0x68] sm:$0xff] %vm617, %v2142
        %2159 = vst.msk [vmem:[%s559 + $0x70] sm:$0xff] %vm617, %v2143
        %2160 = vst.msk [vmem:[%s559 + $0x78] sm:$0xff] %vm617, %v2144
        %s2161 = sand.u32 %s343, 1
        %s2162 = scalar_lea.sflag [#allocation5], %s2161
        %s2163 = sand.u32 %s343, 1
        %s2164 = smul.addr %s2163, 128
        %s2165 = scalar_lea.vmem [#allocation9], %s2164
        // Predicated region
        $region89: #{bottleneck_forward_nhwc.1} parent=67 // pred_check
          %p2166 = pneg %p353
        $region90: #{bottleneck_forward_nhwc.1} parent=67 // pred_check_branch
          %2168 = sbr.rel (%p2166) target = $region92
        $region91: #{bottleneck_forward_nhwc.1} parent=67 // pred_region
          %s2169 = smul.u32 8, %s37
          %s2171 = ssub.s32 2048, 2048
          %2172 = vsyncadd %s2162, %s2171
          %s2173 = smul.addr %s2169, 2
          %s2174 = smul.addr %s36, 32
          %s2175 = sadd.s32 %s2173, %s2174
          %s2176 = smul.addr %s2175, 128
          %s2177 = scalar_lea.hbm %s12, %s2176
          %s2178 = sshll.u32 %s2165, 4
          %s2179 = int_to_ptr.vmem [resolvable:$true] %s2178
          %2184 = dma.vmem_to_hbm [thread:$0]  %s2179, 2048, %s2177, %s2162, 128, 128, 8
        $region92: #{bottleneck_forward_nhwc.1} parent=67 // pred_fallthru
          _
      $region68: #{bottleneck_forward_nhwc.1} parent=5 // pred_fallthru
        _
      %p2185 = scmp.le.s32.totalorder 2, %s27
      // Predicated region
      $region93: #{bottleneck_forward_nhwc.1} parent=5 // pred_check
        %p2186 = pneg %p2185
      $region94: #{bottleneck_forward_nhwc.1} parent=5 // pred_check_branch
        %2188 = sbr.rel (%p2186) target = $region96
      $region95: #{bottleneck_forward_nhwc.1} parent=5 // pred_region
        %s2189 = ssub.s32 %s27, 2
        // Predicated region
        $region97: #{bottleneck_forward_nhwc.1} parent=95 // pred_check
          %p2190 = pneg %p359
        $region98: #{bottleneck_forward_nhwc.1} parent=95 // pred_check_branch
          %2192 = sbr.rel (%p2190) target = $region100
        $region99: #{bottleneck_forward_nhwc.1} parent=95 // pred_region
          %s2193 = sand.u32 %s344, 1
          %s2194 = scalar_lea.sflag [#allocation5], %s2193
          %s2195 = sand.u32 %s344, 1
          %s2196 = smul.addr %s2195, 128
          %s2197 = scalar_lea.vmem [#allocation9], %s2196
          %2198 = dma.done %s2194, 2048
        $region100: #{bottleneck_forward_nhwc.1} parent=95 // pred_fallthru
          _
      $region96: #{bottleneck_forward_nhwc.1} parent=5 // pred_fallthru
        _
    $region6: #{bottleneck_forward_nhwc.1} parent=1 // loop_footer
      %s31 = sadd.s32 1, %s27
    $region7: #{bottleneck_forward_nhwc.1} parent=1 // loop_footer_branch
      %26 = sbr.rel target = $region3
    $region8: #{bottleneck_forward_nhwc.1} parent=1 // loop_exit
      _
    %2199 = vsyncpa [#allocation4], 1
    %s2200 = scalar_lea.sflag [#allocation4], 1
    %2201 = vsyncpa %s2200, 1
    %2202 = vsyncpa [#allocation7], 1
    %s2203 = scalar_lea.sflag [#allocation7], 1
    %2204 = vsyncpa %s2203, 1
    %2205 = vsyncpa [#allocation5], 1
    %s2206 = scalar_lea.sflag [#allocation5], 1
    %2207 = vsyncpa %s2206, 1

</llo_original>
